<compile_context>
chip_gen: v6e
topology: v6e:2x2x1
jax: 0.10.0
libtpu: 0.0.40
codegen_flags: <defaults>
</compile_context>

<pallas_src>
import jax
import jax.numpy as jnp
from jax.experimental import pallas as pl
from jax.experimental.pallas import tpu as pltpu


def _round_up(n, m):
    return (n + m - 1) // m * m


# ----------------------------------------------------------------------------
# Kernel 1: hoisted input projection  gi = x2d @ W_ih_packed + b  (one big matmul)
# ----------------------------------------------------------------------------
def _input_proj_kernel(x_ref, w_ref, b_ref, gi_ref):
    gi_ref[...] = (
        jnp.dot(x_ref[...], w_ref[...], preferred_element_type=jnp.float32)
        + b_ref[...]
    )


# ----------------------------------------------------------------------------
# Kernel 2: GRU recurrence over one time chunk (h persists in scratch across chunks)
# ----------------------------------------------------------------------------
def _gru_recurrence_kernel(gi_ref, whh_ref, bhn_ref, out_ref, h_ref):
    t_chunk, b_blk, _ = gi_ref.shape
    hp = whh_ref.shape[0]

    # h_0 = 0 at the first time chunk of every batch block (nn.GRU default h0).
    @pl.when(pl.program_id(1) == 0)
    def _():
        h_ref[...] = jnp.zeros_like(h_ref)

    # Hoist the b_hn broadcast out of the recurrence (JAX does not CSE broadcasts).
    bhn = jnp.broadcast_to(bhn_ref[...], (b_blk, hp))

    def step(t, h_prev):
        # Hidden projection for all 3 gates: bf16 operands, f32 accumulation on MXU.
        gh = jnp.dot(h_prev.astype(jnp.bfloat16), whh_ref[...],
                     preferred_element_type=jnp.float32)
        gi_t = gi_ref[t]                       # (b_blk, 3*hp), 128-aligned gate blocks
        r = jax.nn.sigmoid(gi_t[:, 0 * hp:1 * hp] + gh[:, 0 * hp:1 * hp])
        z = jax.nn.sigmoid(gi_t[:, 1 * hp:2 * hp] + gh[:, 1 * hp:2 * hp])
        n = jnp.tanh(gi_t[:, 2 * hp:3 * hp] + r * (gh[:, 2 * hp:3 * hp] + bhn))
        h_new = (1.0 - z) * n + z * h_prev
        out_ref[t] = h_new                     # lane-dense (8,128) unmasked store
        return h_new

    # Unrolled time loop -> LLO can overlap gate VPU/EUP work with the next MXU push.
    h_ref[...] = jax.lax.fori_loop(0, t_chunk, step, h_ref[...], unroll=True)


# ----------------------------------------------------------------------------
# One GRU layer (PyTorch weight layout: w_ih (3H, D), w_hh (3H, H), gate order r,z,n)
# ----------------------------------------------------------------------------
def gru_layer(x_tbd, w_ih, w_hh, b_ih, b_hh, *, t_chunk=8):
    T, B, D = x_tbd.shape
    H = w_hh.shape[1]
    f32 = jnp.float32

    Hp = _round_up(H, 128)                     # lane-align every gate block
    Dp = _round_up(D, 128)
    Bp8 = _round_up(B, 8)
    # At most 2 batch blocks (one per v7x TensorCore); v5e/v6e just run them serially.
    b_block = max(8, _round_up(pl.cdiv(Bp8, 2), 8))
    Bp = _round_up(Bp8, b_block)
    Tp = _round_up(T, t_chunk)
    # TODO(synk): for very large T/B/H re-derive t_chunk against v7x's 64 MiB VMEM.

    # --- repack weights: each gate gets its own 128-aligned column block, bf16 ------
    wih_p = jnp.zeros((Dp, 3 * Hp), f32)
    whh_p = jnp.zeros((Hp, 3 * Hp), f32)
    bgi_p = jnp.zeros((1, 3 * Hp), f32)
    bhn_p = jnp.zeros((1, Hp), f32)
    for g in range(3):
        wih_p = wih_p.at[:D, g * Hp:g * Hp + H].set(w_ih[g * H:(g + 1) * H, :].T.astype(f32))
        whh_p = whh_p.at[:H, g * Hp:g * Hp + H].set(w_hh[g * H:(g + 1) * H, :].T.astype(f32))
        bgi_p = bgi_p.at[0, g * Hp:g * Hp + H].set(b_ih[g * H:(g + 1) * H].astype(f32))
    # Fold b_hh's r/z slices into the precomputed input-projection bias
    # (b_hh's n slice must stay inside r * (.) per PyTorch GRU semantics).
    bgi_p = bgi_p.at[0, 0:H].add(b_hh[0:H].astype(f32))
    bgi_p = bgi_p.at[0, Hp:Hp + H].add(b_hh[H:2 * H].astype(f32))
    bhn_p = bhn_p.at[0, :H].set(b_hh[2 * H:3 * H].astype(f32))

    wih_bf = wih_p.astype(jnp.bfloat16)
    whh_bf = whh_p.astype(jnp.bfloat16)

    # --- pad activations (zero padding is exactly neutral for the valid region) -----
    xp = jnp.zeros((Tp, Bp, Dp), jnp.bfloat16)
    xp = xp.at[:T, :B, :D].set(x_tbd.astype(jnp.bfloat16))
    x2d = xp.reshape(Tp * Bp, Dp)

    # --- call 1: hoisted input projection, M = Tp*Bp rows, pipelined over row tiles --
    rows = Tp * Bp
    rm = Bp * t_chunk
    gi2d = pl.pallas_call(
        _input_proj_kernel,
        out_shape=jax.ShapeDtypeStruct((rows, 3 * Hp), f32),
        grid_spec=pltpu.PrefetchScalarGridSpec(
            num_scalar_prefetch=0,
            grid=(rows // rm,),
            in_specs=[pl.BlockSpec((rm, Dp), lambda i: (i, 0)),
                      pl.BlockSpec((Dp, 3 * Hp), lambda i: (0, 0)),
                      pl.BlockSpec((1, 3 * Hp), lambda i: (0, 0))],
            out_specs=pl.BlockSpec((rm, 3 * Hp), lambda i: (i, 0))),
        compiler_params=pltpu.CompilerParams(dimension_semantics=("parallel",)),
    )(x2d, wih_bf, bgi_p)
    gi = gi2d.reshape(Tp, Bp, 3 * Hp)

    # --- call 2: recurrence, grid = (batch blocks [parallel], time chunks [arbitrary])
    out_p = pl.pallas_call(
        _gru_recurrence_kernel,
        out_shape=jax.ShapeDtypeStruct((Tp, Bp, Hp), f32),
        grid_spec=pltpu.PrefetchScalarGridSpec(
            num_scalar_prefetch=0,
            grid=(Bp // b_block, Tp // t_chunk),
            in_specs=[pl.BlockSpec((t_chunk, b_block, 3 * Hp), lambda b, c: (c, b, 0)),
                      pl.BlockSpec((Hp, 3 * Hp), lambda b, c: (0, 0)),
                      pl.BlockSpec((1, Hp), lambda b, c: (0, 0))],
            out_specs=pl.BlockSpec((t_chunk, b_block, Hp), lambda b, c: (c, b, 0)),
            scratch_shapes=[pltpu.VMEM((b_block, Hp), f32)]),
        compiler_params=pltpu.CompilerParams(
            dimension_semantics=("parallel", "arbitrary")),
    )(gi, whh_bf, bhn_p)

    return out_p[:T, :B, :H]


def baseline_gru_forward(x_btd, params, *, t_chunk=8):
    """baselineGRU.forward: out = GRU(x)[0]  (the Linear layer is unused in forward)."""
    h = jnp.transpose(x_btd, (1, 0, 2))        # batch-first -> time-major
    for (w_ih, w_hh, b_ih, b_hh) in params["layers"]:
        h = gru_layer(h, w_ih, w_hh, b_ih, b_hh, t_chunk=t_chunk)
    return jnp.transpose(h, (1, 0, 2))         # back to batch-first (B, T, H)


def init_params(key, input_size, hidden_size, num_layers):
    """Deterministic init mirroring nn.GRU shapes: U(-1/sqrt(H), 1/sqrt(H))."""
    bound = 1.0 / jnp.sqrt(jnp.float32(hidden_size))
    layers = []
    for layer in range(num_layers):
        d_in = input_size if layer == 0 else hidden_size
        key, k1, k2, k3, k4 = jax.random.split(key, 5)
        w_ih = jax.random.uniform(k1, (3 * hidden_size, d_in), jnp.float32, -bound, bound)
        w_hh = jax.random.uniform(k2, (3 * hidden_size, hidden_size), jnp.float32, -bound, bound)
        b_ih = jax.random.uniform(k3, (3 * hidden_size,), jnp.float32, -bound, bound)
        b_hh = jax.random.uniform(k4, (3 * hidden_size,), jnp.float32, -bound, bound)
        layers.append((w_ih, w_hh, b_ih, b_hh))
    return {"layers": layers}


def _reference_forward(x_btd, params, *, bf16_matmul=False):
    """Pure-JAX lax.scan reference with PyTorch nn.GRU semantics.
    bf16_matmul=True mirrors the kernel's numerics (bf16 operands, f32 accumulation)."""
    h_seq = jnp.transpose(x_btd, (1, 0, 2)).astype(jnp.float32)
    for (w_ih, w_hh, b_ih, b_hh) in params["layers"]:
        H = w_hh.shape[1]
        B = h_seq.shape[1]
        op_dtype = jnp.bfloat16 if bf16_matmul else jnp.float32
        wih_t = w_ih.T.astype(op_dtype)
        whh_t = w_hh.T.astype(op_dtype)

        def step(h_prev, x_t, wih_t=wih_t, whh_t=whh_t, b_ih=b_ih, b_hh=b_hh,
                 H=H, op_dtype=op_dtype):
            gi = jnp.dot(x_t.astype(op_dtype), wih_t,
                         preferred_element_type=jnp.float32) + b_ih
            gh = jnp.dot(h_prev.astype(op_dtype), whh_t,
                         preferred_element_type=jnp.float32) + b_hh
            r = jax.nn.sigmoid(gi[:, :H] + gh[:, :H])
            z = jax.nn.sigmoid(gi[:, H:2 * H] + gh[:, H:2 * H])
            n = jnp.tanh(gi[:, 2 * H:] + r * gh[:, 2 * H:])
            h_new = (1.0 - z) * n + z * h_prev
            return h_new, h_new

        _, h_seq = jax.lax.scan(step, jnp.zeros((B, H), jnp.float32), h_seq)
    return jnp.transpose(h_seq, (1, 0, 2))


if __name__ == "__main__":
    batch, seq, input_size, hidden_size, num_layers = 2, 8, 16, 32, 2

    key = jax.random.PRNGKey(0)
    key, xkey = jax.random.split(key)
    x = jax.random.normal(xkey, (batch, seq, input_size), jnp.float32)
    params = init_params(key, input_size, hidden_size, num_layers)

    # t_chunk=4 so the test exercises multiple time chunks (h carried across grid steps).
    fwd = jax.jit(lambda xx, pp: baseline_gru_forward(xx, pp, t_chunk=4))
    out = jax.block_until_ready(fwd(x, params))

    assert out.shape == (batch, seq, hidden_size)
    assert out.dtype == jnp.float32

    ref_bf16 = _reference_forward(x, params, bf16_matmul=True)   # kernel-matched numerics
    ref_f32 = _reference_forward(x, params, bf16_matmul=False)   # PyTorch f32 semantics

    err_bf16 = float(jnp.max(jnp.abs(out - ref_bf16)))
    err_f32 = float(jnp.max(jnp.abs(out - ref_f32)))
    assert jnp.allclose(out, ref_bf16, atol=5e-3, rtol=5e-3), \
        f"mismatch vs bf16-matched reference (max abs err {err_bf16})"
    assert jnp.allclose(out, ref_f32, atol=1e-1, rtol=1e-1), \
        f"mismatch vs f32 reference (max abs err {err_f32})"

    print("KERNEL_OK")
</pallas_src>

<mosaic_0001>
module attributes {stable_mosaic.version = 11 : i64} {
  func.func @_input_proj_kernel(%arg0: i32, %arg1: memref<32x128xbf16, #tpu.memory_space<vmem>>, %arg2: memref<128x384xbf16, #tpu.memory_space<vmem>>, %arg3: memref<1x384xf32, #tpu.memory_space<vmem>>, %arg4: memref<32x384xf32, #tpu.memory_space<vmem>>) attributes {dimension_semantics = [#tpu.dimension_semantics<parallel>], iteration_bounds = array<i64: 2>, scalar_prefetch = 0 : i64, scratch_operands = 0 : i64, tpu.core_type = #tpu.core_type<tc>, window_params = [{transform_indices = @transform_0, window_bounds = array<i64: 32, 128>}, {pipeline_mode = #tpu.pipeline_mode<synchronous>, transform_indices = @transform_1, window_bounds = array<i64: 128, 384>}, {pipeline_mode = #tpu.pipeline_mode<synchronous>, transform_indices = @transform_2, window_bounds = array<i64: 1, 384>}, {transform_indices = @transform_3, window_bounds = array<i64: 32, 384>}]} {
    %c0 = arith.constant 0 : index
    %c0_0 = arith.constant 0 : index
    %0 = vector.load %arg1[%c0, %c0_0] : memref<32x128xbf16, #tpu.memory_space<vmem>>, vector<32x128xbf16>
    %c0_1 = arith.constant 0 : index
    %c0_2 = arith.constant 0 : index
    %1 = vector.load %arg2[%c0_1, %c0_2] : memref<128x384xbf16, #tpu.memory_space<vmem>>, vector<128x384xbf16>
    %cst = arith.constant dense<0.000000e+00> : vector<32x384xf32>
    %2 = tpu.matmul %0, %1, %cst {dimension_numbers = #tpu.dot_dimension_numbers<[1], [0], [0], [1], [0, 0, 1, 1], [], []>} : vector<32x128xbf16>, vector<128x384xbf16>, vector<32x384xf32> -> vector<32x384xf32>
    %c0_3 = arith.constant 0 : index
    %c0_4 = arith.constant 0 : index
    %3 = vector.load %arg3[%c0_3, %c0_4] : memref<1x384xf32, #tpu.memory_space<vmem>>, vector<1x384xf32>
    %4 = vector.broadcast %3 : vector<1x384xf32> to vector<32x384xf32>
    %5 = arith.addf %2, %4 : vector<32x384xf32>
    %c0_5 = arith.constant 0 : index
    %c0_6 = arith.constant 0 : index
    %6 = vector.load %arg4[%c0_5, %c0_6] : memref<32x384xf32, #tpu.memory_space<vmem>>, vector<32x384xf32>
    tpu.vector_store %arg4[%c0_5, %c0_6], %5 {strides = array<i32>} : memref<32x384xf32, #tpu.memory_space<vmem>>, vector<32x384xf32>,
    return
  }
  func.func @transform_0(%arg0: i32) -> (i32, i32) {
    %c0_i32 = arith.constant 0 : i32
    %c0_i32_0 = arith.constant 0 : i32
    return %arg0, %c0_i32 : i32, i32
  }
  func.func @transform_1(%arg0: i32) -> (i32, i32) {
    %c0_i32 = arith.constant 0 : i32
    %c0_i32_0 = arith.constant 0 : i32
    %c0_i32_1 = arith.constant 0 : i32
    return %c0_i32, %c0_i32_0 : i32, i32
  }
  func.func @transform_2(%arg0: i32) -> (i32, i32) {
    %c0_i32 = arith.constant 0 : i32
    %c0_i32_0 = arith.constant 0 : i32
    %c0_i32_1 = arith.constant 0 : i32
    return %c0_i32, %c0_i32_0 : i32, i32
  }
  func.func @transform_3(%arg0: i32) -> (i32, i32) {
    %c0_i32 = arith.constant 0 : i32
    %c0_i32_0 = arith.constant 0 : i32
    return %arg0, %c0_i32 : i32, i32
  }
}

module attributes {stable_mosaic.version = 11 : i64} {
  func.func @_gru_recurrence_kernel(%arg0: i32, %arg1: i32, %arg2: memref<4x8x384xf32, #tpu.memory_space<vmem>>, %arg3: memref<128x384xbf16, #tpu.memory_space<vmem>>, %arg4: memref<1x128xf32, #tpu.memory_space<vmem>>, %arg5: memref<4x8x128xf32, #tpu.memory_space<vmem>>, %arg6: memref<8x128xf32, #tpu.memory_space<vmem>>) attributes {dimension_semantics = [#tpu.dimension_semantics<parallel>, #tpu.dimension_semantics<arbitrary>], iteration_bounds = array<i64: 1, 2>, scalar_prefetch = 0 : i64, scratch_operands = 1 : i64, tpu.core_type = #tpu.core_type<tc>, window_params = [{transform_indices = @transform_0, window_bounds = array<i64: 4, 8, 384>}, {pipeline_mode = #tpu.pipeline_mode<synchronous>, transform_indices = @transform_1, window_bounds = array<i64: 128, 384>}, {pipeline_mode = #tpu.pipeline_mode<synchronous>, transform_indices = @transform_2, window_bounds = array<i64: 1, 128>}, {transform_indices = @transform_3, window_bounds = array<i64: 4, 8, 128>}]} {
    %c0_i32 = arith.constant 0 : i32
    %0 = arith.cmpi eq, %arg1, %c0_i32 : i32
    %1 = arith.extui %0 : i1 to i32
    %c0_i32_0 = arith.constant 0 : i32
    %2 = arith.cmpi ne, %1, %c0_i32_0 : i32
    scf.if %2 {
      %cst_46 = arith.constant 0.000000e+00 : f32
      %156 = vector.broadcast %cst_46 : f32 to vector<8x128xf32>
      %c0_47 = arith.constant 0 : index
      %c0_48 = arith.constant 0 : index
      %157 = vector.load %arg6[%c0_47, %c0_48] : memref<8x128xf32, #tpu.memory_space<vmem>>, vector<8x128xf32>
      tpu.vector_store %arg6[%c0_47, %c0_48], %156 {strides = array<i32>} : memref<8x128xf32, #tpu.memory_space<vmem>>, vector<8x128xf32>,
    } else {
    }
    %c0 = arith.constant 0 : index
    %c0_1 = arith.constant 0 : index
    %3 = vector.load %arg4[%c0, %c0_1] : memref<1x128xf32, #tpu.memory_space<vmem>>, vector<1x128xf32>
    %4 = vector.shape_cast %3 : vector<1x128xf32> to vector<1x128xf32>
    %5 = vector.broadcast %4 : vector<1x128xf32> to vector<8x128xf32>
    %c0_2 = arith.constant 0 : index
    %c0_3 = arith.constant 0 : index
    %6 = vector.load %arg6[%c0_2, %c0_3] : memref<8x128xf32, #tpu.memory_space<vmem>>, vector<8x128xf32>
    %c0_i32_4 = arith.constant 0 : i32
    %7 = arith.truncf %6 : vector<8x128xf32> to vector<8x128xbf16>
    %c0_5 = arith.constant 0 : index
    %c0_6 = arith.constant 0 : index
    %8 = vector.load %arg3[%c0_5, %c0_6] : memref<128x384xbf16, #tpu.memory_space<vmem>>, vector<128x384xbf16>
    %cst = arith.constant dense<0.000000e+00> : vector<8x384xf32>
    %9 = tpu.matmul %7, %8, %cst {dimension_numbers = #tpu.dot_dimension_numbers<[1], [0], [0], [1], [0, 0, 1, 1], [], []>} : vector<8x128xbf16>, vector<128x384xbf16>, vector<8x384xf32> -> vector<8x384xf32>
    %10 = arith.index_cast %c0_i32_4 : i32 to index
    %c0_7 = arith.constant 0 : index
    %c0_8 = arith.constant 0 : index
    %11 = vector.load %arg2[%10, %c0_7, %c0_8] : memref<4x8x384xf32, #tpu.memory_space<vmem>>, vector<1x8x384xf32>
    %12 = vector.shape_cast %11 : vector<1x8x384xf32> to vector<8x384xf32>
    %13 = vector.extract_strided_slice %12 {offsets = [0, 0], sizes = [8, 128], strides = [1, 1]} : vector<8x384xf32> to vector<8x128xf32>
    %14 = vector.extract_strided_slice %9 {offsets = [0, 0], sizes = [8, 128], strides = [1, 1]} : vector<8x384xf32> to vector<8x128xf32>
    %15 = arith.addf %13, %14 : vector<8x128xf32>
    %16 = arith.negf %15 : vector<8x128xf32>
    %17 = math.exp %16 : vector<8x128xf32>
    %cst_9 = arith.constant 1.000000e+00 : f32
    %18 = vector.broadcast %cst_9 : f32 to vector<8x128xf32>
    %19 = arith.addf %18, %17 : vector<8x128xf32>
    %20 = arith.divf %18, %19 : vector<8x128xf32>
    %21 = vector.extract_strided_slice %12 {offsets = [0, 128], sizes = [8, 128], strides = [1, 1]} : vector<8x384xf32> to vector<8x128xf32>
    %22 = vector.extract_strided_slice %9 {offsets = [0, 128], sizes = [8, 128], strides = [1, 1]} : vector<8x384xf32> to vector<8x128xf32>
    %23 = arith.addf %21, %22 : vector<8x128xf32>
    %24 = arith.negf %23 : vector<8x128xf32>
    %25 = math.exp %24 : vector<8x128xf32>
    %cst_10 = arith.constant 1.000000e+00 : f32
    %26 = vector.broadcast %cst_10 : f32 to vector<8x128xf32>
    %27 = arith.addf %26, %25 : vector<8x128xf32>
    %28 = arith.divf %26, %27 : vector<8x128xf32>
    %29 = vector.extract_strided_slice %12 {offsets = [0, 256], sizes = [8, 128], strides = [1, 1]} : vector<8x384xf32> to vector<8x128xf32>
    %30 = vector.extract_strided_slice %9 {offsets = [0, 256], sizes = [8, 128], strides = [1, 1]} : vector<8x384xf32> to vector<8x128xf32>
    %31 = arith.addf %30, %5 : vector<8x128xf32>
    %32 = arith.mulf %20, %31 : vector<8x128xf32>
    %33 = arith.addf %29, %32 : vector<8x128xf32>
    %34 = math.tanh %33 : vector<8x128xf32>
    %cst_11 = arith.constant 1.000000e+00 : f32
    %35 = vector.broadcast %cst_11 : f32 to vector<8x128xf32>
    %36 = arith.subf %35, %28 : vector<8x128xf32>
    %37 = arith.mulf %36, %34 : vector<8x128xf32>
    %38 = arith.mulf %28, %6 : vector<8x128xf32>
    %39 = arith.addf %37, %38 : vector<8x128xf32>
    %40 = arith.index_cast %c0_i32_4 : i32 to index
    %c0_12 = arith.constant 0 : index
    %c0_13 = arith.constant 0 : index
    %41 = vector.load %arg5[%40, %c0_12, %c0_13] : memref<4x8x128xf32, #tpu.memory_space<vmem>>, vector<1x8x128xf32>
    %42 = vector.shape_cast %41 : vector<1x8x128xf32> to vector<8x128xf32>
    %43 = vector.shape_cast %39 : vector<8x128xf32> to vector<1x8x128xf32>
    tpu.vector_store %arg5[%40, %c0_12, %c0_13], %43 {strides = array<i32>} : memref<4x8x128xf32, #tpu.memory_space<vmem>>, vector<1x8x128xf32>,
    %c1_i32 = arith.constant 1 : i32
    %44 = arith.truncf %39 : vector<8x128xf32> to vector<8x128xbf16>
    %c0_14 = arith.constant 0 : index
    %c0_15 = arith.constant 0 : index
    %45 = vector.load %arg3[%c0_14, %c0_15] : memref<128x384xbf16, #tpu.memory_space<vmem>>, vector<128x384xbf16>
    %cst_16 = arith.constant dense<0.000000e+00> : vector<8x384xf32>
    %46 = tpu.matmul %44, %45, %cst_16 {dimension_numbers = #tpu.dot_dimension_numbers<[1], [0], [0], [1], [0, 0, 1, 1], [], []>} : vector<8x128xbf16>, vector<128x384xbf16>, vector<8x384xf32> -> vector<8x384xf32>
    %47 = arith.index_cast %c1_i32 : i32 to index
    %c0_17 = arith.constant 0 : index
    %c0_18 = arith.constant 0 : index
    %48 = vector.load %arg2[%47, %c0_17, %c0_18] : memref<4x8x384xf32, #tpu.memory_space<vmem>>, vector<1x8x384xf32>
    %49 = vector.shape_cast %48 : vector<1x8x384xf32> to vector<8x384xf32>
    %50 = vector.extract_strided_slice %49 {offsets = [0, 0], sizes = [8, 128], strides = [1, 1]} : vector<8x384xf32> to vector<8x128xf32>
    %51 = vector.extract_strided_slice %46 {offsets = [0, 0], sizes = [8, 128], strides = [1, 1]} : vector<8x384xf32> to vector<8x128xf32>
    %52 = arith.addf %50, %51 : vector<8x128xf32>
    %53 = arith.negf %52 : vector<8x128xf32>
    %54 = math.exp %53 : vector<8x128xf32>
    %cst_19 = arith.constant 1.000000e+00 : f32
    %55 = vector.broadcast %cst_19 : f32 to vector<8x128xf32>
    %56 = arith.addf %55, %54 : vector<8x128xf32>
    %57 = arith.divf %55, %56 : vector<8x128xf32>
    %58 = vector.extract_strided_slice %49 {offsets = [0, 128], sizes = [8, 128], strides = [1, 1]} : vector<8x384xf32> to vector<8x128xf32>
    %59 = vector.extract_strided_slice %46 {offsets = [0, 128], sizes = [8, 128], strides = [1, 1]} : vector<8x384xf32> to vector<8x128xf32>
    %60 = arith.addf %58, %59 : vector<8x128xf32>
    %61 = arith.negf %60 : vector<8x128xf32>
    %62 = math.exp %61 : vector<8x128xf32>
    %cst_20 = arith.constant 1.000000e+00 : f32
    %63 = vector.broadcast %cst_20 : f32 to vector<8x128xf32>
    %64 = arith.addf %63, %62 : vector<8x128xf32>
    %65 = arith.divf %63, %64 : vector<8x128xf32>
    %66 = vector.extract_strided_slice %49 {offsets = [0, 256], sizes = [8, 128], strides = [1, 1]} : vector<8x384xf32> to vector<8x128xf32>
    %67 = vector.extract_strided_slice %46 {offsets = [0, 256], sizes = [8, 128], strides = [1, 1]} : vector<8x384xf32> to vector<8x128xf32>
    %68 = arith.addf %67, %5 : vector<8x128xf32>
    %69 = arith.mulf %57, %68 : vector<8x128xf32>
    %70 = arith.addf %66, %69 : vector<8x128xf32>
    %71 = math.tanh %70 : vector<8x128xf32>
    %cst_21 = arith.constant 1.000000e+00 : f32
    %72 = vector.broadcast %cst_21 : f32 to vector<8x128xf32>
    %73 = arith.subf %72, %65 : vector<8x128xf32>
    %74 = arith.mulf %73, %71 : vector<8x128xf32>
    %75 = arith.mulf %65, %39 : vector<8x128xf32>
    %76 = arith.addf %74, %75 : vector<8x128xf32>
    %77 = arith.index_cast %c1_i32 : i32 to index
    %c0_22 = arith.constant 0 : index
    %c0_23 = arith.constant 0 : index
    %78 = vector.load %arg5[%77, %c0_22, %c0_23] : memref<4x8x128xf32, #tpu.memory_space<vmem>>, vector<1x8x128xf32>
    %79 = vector.shape_cast %78 : vector<1x8x128xf32> to vector<8x128xf32>
    %80 = vector.shape_cast %76 : vector<8x128xf32> to vector<1x8x128xf32>
    tpu.vector_store %arg5[%77, %c0_22, %c0_23], %80 {strides = array<i32>} : memref<4x8x128xf32, #tpu.memory_space<vmem>>, vector<1x8x128xf32>,
    %c2_i32 = arith.constant 2 : i32
    %81 = arith.truncf %76 : vector<8x128xf32> to vector<8x128xbf16>
    %c0_24 = arith.constant 0 : index
    %c0_25 = arith.constant 0 : index
    %82 = vector.load %arg3[%c0_24, %c0_25] : memref<128x384xbf16, #tpu.memory_space<vmem>>, vector<128x384xbf16>
    %cst_26 = arith.constant dense<0.000000e+00> : vector<8x384xf32>
    %83 = tpu.matmul %81, %82, %cst_26 {dimension_numbers = #tpu.dot_dimension_numbers<[1], [0], [0], [1], [0, 0, 1, 1], [], []>} : vector<8x128xbf16>, vector<128x384xbf16>, vector<8x384xf32> -> vector<8x384xf32>
    %84 = arith.index_cast %c2_i32 : i32 to index
    %c0_27 = arith.constant 0 : index
    %c0_28 = arith.constant 0 : index
    %85 = vector.load %arg2[%84, %c0_27, %c0_28] : memref<4x8x384xf32, #tpu.memory_space<vmem>>, vector<1x8x384xf32>
    %86 = vector.shape_cast %85 : vector<1x8x384xf32> to vector<8x384xf32>
    %87 = vector.extract_strided_slice %86 {offsets = [0, 0], sizes = [8, 128], strides = [1, 1]} : vector<8x384xf32> to vector<8x128xf32>
    %88 = vector.extract_strided_slice %83 {offsets = [0, 0], sizes = [8, 128], strides = [1, 1]} : vector<8x384xf32> to vector<8x128xf32>
    %89 = arith.addf %87, %88 : vector<8x128xf32>
    %90 = arith.negf %89 : vector<8x128xf32>
    %91 = math.exp %90 : vector<8x128xf32>
    %cst_29 = arith.constant 1.000000e+00 : f32
    %92 = vector.broadcast %cst_29 : f32 to vector<8x128xf32>
    %93 = arith.addf %92, %91 : vector<8x128xf32>
    %94 = arith.divf %92, %93 : vector<8x128xf32>
    %95 = vector.extract_strided_slice %86 {offsets = [0, 128], sizes = [8, 128], strides = [1, 1]} : vector<8x384xf32> to vector<8x128xf32>
    %96 = vector.extract_strided_slice %83 {offsets = [0, 128], sizes = [8, 128], strides = [1, 1]} : vector<8x384xf32> to vector<8x128xf32>
    %97 = arith.addf %95, %96 : vector<8x128xf32>
    %98 = arith.negf %97 : vector<8x128xf32>
    %99 = math.exp %98 : vector<8x128xf32>
    %cst_30 = arith.constant 1.000000e+00 : f32
    %100 = vector.broadcast %cst_30 : f32 to vector<8x128xf32>
    %101 = arith.addf %100, %99 : vector<8x128xf32>
    %102 = arith.divf %100, %101 : vector<8x128xf32>
    %103 = vector.extract_strided_slice %86 {offsets = [0, 256], sizes = [8, 128], strides = [1, 1]} : vector<8x384xf32> to vector<8x128xf32>
    %104 = vector.extract_strided_slice %83 {offsets = [0, 256], sizes = [8, 128], strides = [1, 1]} : vector<8x384xf32> to vector<8x128xf32>
    %105 = arith.addf %104, %5 : vector<8x128xf32>
    %106 = arith.mulf %94, %105 : vector<8x128xf32>
    %107 = arith.addf %103, %106 : vector<8x128xf32>
    %108 = math.tanh %107 : vector<8x128xf32>
    %cst_31 = arith.constant 1.000000e+00 : f32
    %109 = vector.broadcast %cst_31 : f32 to vector<8x128xf32>
    %110 = arith.subf %109, %102 : vector<8x128xf32>
    %111 = arith.mulf %110, %108 : vector<8x128xf32>
    %112 = arith.mulf %102, %76 : vector<8x128xf32>
    %113 = arith.addf %111, %112 : vector<8x128xf32>
    %114 = arith.index_cast %c2_i32 : i32 to index
    %c0_32 = arith.constant 0 : index
    %c0_33 = arith.constant 0 : index
    %115 = vector.load %arg5[%114, %c0_32, %c0_33] : memref<4x8x128xf32, #tpu.memory_space<vmem>>, vector<1x8x128xf32>
    %116 = vector.shape_cast %115 : vector<1x8x128xf32> to vector<8x128xf32>
    %117 = vector.shape_cast %113 : vector<8x128xf32> to vector<1x8x128xf32>
    tpu.vector_store %arg5[%114, %c0_32, %c0_33], %117 {strides = array<i32>} : memref<4x8x128xf32, #tpu.memory_space<vmem>>, vector<1x8x128xf32>,
    %c3_i32 = arith.constant 3 : i32
    %118 = arith.truncf %113 : vector<8x128xf32> to vector<8x128xbf16>
    %c0_34 = arith.constant 0 : index
    %c0_35 = arith.constant 0 : index
    %119 = vector.load %arg3[%c0_34, %c0_35] : memref<128x384xbf16, #tpu.memory_space<vmem>>, vector<128x384xbf16>
    %cst_36 = arith.constant dense<0.000000e+00> : vector<8x384xf32>
    %120 = tpu.matmul %118, %119, %cst_36 {dimension_numbers = #tpu.dot_dimension_numbers<[1], [0], [0], [1], [0, 0, 1, 1], [], []>} : vector<8x128xbf16>, vector<128x384xbf16>, vector<8x384xf32> -> vector<8x384xf32>
    %121 = arith.index_cast %c3_i32 : i32 to index
    %c0_37 = arith.constant 0 : index
    %c0_38 = arith.constant 0 : index
    %122 = vector.load %arg2[%121, %c0_37, %c0_38] : memref<4x8x384xf32, #tpu.memory_space<vmem>>, vector<1x8x384xf32>
    %123 = vector.shape_cast %122 : vector<1x8x384xf32> to vector<8x384xf32>
    %124 = vector.extract_strided_slice %123 {offsets = [0, 0], sizes = [8, 128], strides = [1, 1]} : vector<8x384xf32> to vector<8x128xf32>
    %125 = vector.extract_strided_slice %120 {offsets = [0, 0], sizes = [8, 128], strides = [1, 1]} : vector<8x384xf32> to vector<8x128xf32>
    %126 = arith.addf %124, %125 : vector<8x128xf32>
    %127 = arith.negf %126 : vector<8x128xf32>
    %128 = math.exp %127 : vector<8x128xf32>
    %cst_39 = arith.constant 1.000000e+00 : f32
    %129 = vector.broadcast %cst_39 : f32 to vector<8x128xf32>
    %130 = arith.addf %129, %128 : vector<8x128xf32>
    %131 = arith.divf %129, %130 : vector<8x128xf32>
    %132 = vector.extract_strided_slice %123 {offsets = [0, 128], sizes = [8, 128], strides = [1, 1]} : vector<8x384xf32> to vector<8x128xf32>
    %133 = vector.extract_strided_slice %120 {offsets = [0, 128], sizes = [8, 128], strides = [1, 1]} : vector<8x384xf32> to vector<8x128xf32>
    %134 = arith.addf %132, %133 : vector<8x128xf32>
    %135 = arith.negf %134 : vector<8x128xf32>
    %136 = math.exp %135 : vector<8x128xf32>
    %cst_40 = arith.constant 1.000000e+00 : f32
    %137 = vector.broadcast %cst_40 : f32 to vector<8x128xf32>
    %138 = arith.addf %137, %136 : vector<8x128xf32>
    %139 = arith.divf %137, %138 : vector<8x128xf32>
    %140 = vector.extract_strided_slice %123 {offsets = [0, 256], sizes = [8, 128], strides = [1, 1]} : vector<8x384xf32> to vector<8x128xf32>
    %141 = vector.extract_strided_slice %120 {offsets = [0, 256], sizes = [8, 128], strides = [1, 1]} : vector<8x384xf32> to vector<8x128xf32>
    %142 = arith.addf %141, %5 : vector<8x128xf32>
    %143 = arith.mulf %131, %142 : vector<8x128xf32>
    %144 = arith.addf %140, %143 : vector<8x128xf32>
    %145 = math.tanh %144 : vector<8x128xf32>
    %cst_41 = arith.constant 1.000000e+00 : f32
    %146 = vector.broadcast %cst_41 : f32 to vector<8x128xf32>
    %147 = arith.subf %146, %139 : vector<8x128xf32>
    %148 = arith.mulf %147, %145 : vector<8x128xf32>
    %149 = arith.mulf %139, %113 : vector<8x128xf32>
    %150 = arith.addf %148, %149 : vector<8x128xf32>
    %151 = arith.index_cast %c3_i32 : i32 to index
    %c0_42 = arith.constant 0 : index
    %c0_43 = arith.constant 0 : index
    %152 = vector.load %arg5[%151, %c0_42, %c0_43] : memref<4x8x128xf32, #tpu.memory_space<vmem>>, vector<1x8x128xf32>
    %153 = vector.shape_cast %152 : vector<1x8x128xf32> to vector<8x128xf32>
    %154 = vector.shape_cast %150 : vector<8x128xf32> to vector<1x8x128xf32>
    tpu.vector_store %arg5[%151, %c0_42, %c0_43], %154 {strides = array<i32>} : memref<4x8x128xf32, #tpu.memory_space<vmem>>, vector<1x8x128xf32>,
    %c4_i32 = arith.constant 4 : i32
    %c0_44 = arith.constant 0 : index
    %c0_45 = arith.constant 0 : index
    %155 = vector.load %arg6[%c0_44, %c0_45] : memref<8x128xf32, #tpu.memory_space<vmem>>, vector<8x128xf32>
    tpu.vector_store %arg6[%c0_44, %c0_45], %150 {strides = array<i32>} : memref<8x128xf32, #tpu.memory_space<vmem>>, vector<8x128xf32>,
    return
  }
  func.func @transform_0(%arg0: i32, %arg1: i32) -> (i32, i32, i32) {
    %c0_i32 = arith.constant 0 : i32
    %c0_i32_0 = arith.constant 0 : i32
    return %arg1, %arg0, %c0_i32 : i32, i32, i32
  }
  func.func @transform_1(%arg0: i32, %arg1: i32) -> (i32, i32) {
    %c0_i32 = arith.constant 0 : i32
    %c0_i32_0 = arith.constant 0 : i32
    %c0_i32_1 = arith.constant 0 : i32
    return %c0_i32, %c0_i32_0 : i32, i32
  }
  func.func @transform_2(%arg0: i32, %arg1: i32) -> (i32, i32) {
    %c0_i32 = arith.constant 0 : i32
    %c0_i32_0 = arith.constant 0 : i32
    %c0_i32_1 = arith.constant 0 : i32
    return %c0_i32, %c0_i32_0 : i32, i32
  }
  func.func @transform_3(%arg0: i32, %arg1: i32) -> (i32, i32, i32) {
    %c0_i32 = arith.constant 0 : i32
    %c0_i32_0 = arith.constant 0 : i32
    return %arg1, %arg0, %c0_i32 : i32, i32, i32
  }
}

</mosaic_0001>

<llo_original>
// kernel: _lambda_.4
$region0: #{_lambda_.4}
  #allocation0 [shape = 'u32[]', space=smem, size = 0x4, offset = 0x4, fixed_abs, tag = 'smem constant byte address 0x4 - core index']
  #allocation1 [shape = 'u32[144,128]{1,0:T(1,128)}', space=vmem, size = 0x12000, scoped, tag = 'internal scratch']
  %s0 = inlined_call_operand.vmem [shape: bf16[64,128], index: 0, kind: input, shape index: {}]
  %s1 = inlined_call_operand.vmem [shape: bf16[128,384], index: 1, kind: input, shape index: {}]
  %s2 = inlined_call_operand.vmem [shape: f32[1,384], index: 2, kind: input, shape index: {}]
  %s3 = inlined_call_operand.vmem [shape: f32[64,384], index: 3, kind: output, shape index: {}]
  %s4 = sld [smem:[#allocation0]]
  $region45: #{_lambda_.4} parent=0
    _
  %s6 = ssub.s32 1, %s4
  %s7 = scalar_select 0, %s6, %s4
  loop: start=0, step=1, limit=4
  $region2: #{_lambda_.4} parent=0 // loop_pre_header
    _
  $region3: #{_lambda_.4} parent=0 // loop_header
    %s9 = sphi 0, %s13
    %p10 = scmp.ge.s32.totalorder %s9, 4
    %s19 = sphi 0, %s21
    %s22 = sphi 0, %s19
    %s23 = sphi 0, %s22
    %s39 = sphi 0, %s23
    %s43 = sphi 0, %s43
    %s45 = sphi 0, %s43
    %s46 = sphi 0, %s45
    %s60 = sphi 0, %s46
    %s64 = sphi 0, %s64
    %s66 = sphi 0, %s64
    %s67 = sphi 0, %s66
    %s81 = sphi 0, %s67
    %s87 = sphi 0, %s89
    %s90 = sphi 0, %s87
    %s91 = sphi 0, %s90
    %s107 = sphi 0, %s91
  $region4: #{_lambda_.4} parent=0 // loop_header_branch
    %12 = sbr.rel (%p10) target = $region8
  $region5: #{_lambda_.4} parent=0 // loop_body
    %s14 = ssub.s32 %s9, 1
    %s15 = ssub.s32 %s9, 2
    %s16 = sadd.s32 %s9, 1
    %s17 = ssub.s32 %s9, %s16
    %p18 = scmp.eq.s32.totalorder %s17, 0
    %s20 = sadd.s32 %s19, 1
    %s21 = scalar_select %p18, %s19, %s20
    %p24 = pneg %p18
    %p25 = scmp.eq.s32.totalorder %s9, 1
    %p26 = por %p24, %p25
    %p27 = scmp.ne.s32.totalorder %s19, %s22
    %p28 = scmp.eq.s32.totalorder %s9, 0
    %p29 = por %p27, %p28
    %p30 = scmp.ne.s32.totalorder %s19, %s22
    %p31 = scmp.eq.s32.totalorder %s14, 1
    %p32 = por %p30, %p31
    %p33 = scmp.ne.s32.totalorder %s22, %s23
    %p34 = scmp.eq.s32.totalorder %s14, 0
    %p35 = por %p33, %p34
    %p36 = scmp.ne.s32.totalorder %s22, %s23
    %p37 = scmp.eq.s32.totalorder %s15, 1
    %p38 = por %p36, %p37
    %p40 = scmp.ne.s32.totalorder %s23, %s39
    %p41 = scmp.eq.s32.totalorder %s15, 0
    %p42 = por %p40, %p41
    %s44 = sadd.s32 %s43, 1
    %p47 = scmp.eq.s32.totalorder %s9, 1
    %p48 = scmp.ne.s32.totalorder %s43, %s45
    %p49 = scmp.eq.s32.totalorder %s9, 0
    %p50 = por %p48, %p49
    %p51 = scmp.ne.s32.totalorder %s43, %s45
    %p52 = scmp.eq.s32.totalorder %s14, 1
    %p53 = por %p51, %p52
    %p54 = scmp.ne.s32.totalorder %s45, %s46
    %p55 = scmp.eq.s32.totalorder %s14, 0
    %p56 = por %p54, %p55
    %p57 = scmp.ne.s32.totalorder %s45, %s46
    %p58 = scmp.eq.s32.totalorder %s15, 1
    %p59 = por %p57, %p58
    %p61 = scmp.ne.s32.totalorder %s46, %s60
    %p62 = scmp.eq.s32.totalorder %s15, 0
    %p63 = por %p61, %p62
    %s65 = sadd.s32 %s64, 1
    %p68 = scmp.eq.s32.totalorder %s9, 1
    %p69 = scmp.ne.s32.totalorder %s64, %s66
    %p70 = scmp.eq.s32.totalorder %s9, 0
    %p71 = por %p69, %p70
    %p72 = scmp.ne.s32.totalorder %s64, %s66
    %p73 = scmp.eq.s32.totalorder %s14, 1
    %p74 = por %p72, %p73
    %p75 = scmp.ne.s32.totalorder %s66, %s67
    %p76 = scmp.eq.s32.totalorder %s14, 0
    %p77 = por %p75, %p76
    %p78 = scmp.ne.s32.totalorder %s66, %s67
    %p79 = scmp.eq.s32.totalorder %s15, 1
    %p80 = por %p78, %p79
    %p82 = scmp.ne.s32.totalorder %s67, %s81
    %p83 = scmp.eq.s32.totalorder %s15, 0
    %p84 = por %p82, %p83
    %s85 = ssub.s32 %s9, %s16
    %p86 = scmp.eq.s32.totalorder %s85, 0
    %s88 = sadd.s32 %s87, 1
    %s89 = scalar_select %p86, %s87, %s88
    %p92 = pneg %p86
    %p93 = scmp.eq.s32.totalorder %s9, 1
    %p94 = por %p92, %p93
    %p95 = scmp.ne.s32.totalorder %s87, %s90
    %p96 = scmp.eq.s32.totalorder %s9, 0
    %p97 = por %p95, %p96
    %p98 = scmp.ne.s32.totalorder %s87, %s90
    %p99 = scmp.eq.s32.totalorder %s14, 1
    %p100 = por %p98, %p99
    %p101 = scmp.ne.s32.totalorder %s90, %s91
    %p102 = scmp.eq.s32.totalorder %s14, 0
    %p103 = por %p101, %p102
    %p104 = scmp.ne.s32.totalorder %s90, %s91
    %p105 = scmp.eq.s32.totalorder %s15, 1
    %p106 = por %p104, %p105
    %p108 = scmp.ne.s32.totalorder %s91, %s107
    %p109 = scmp.eq.s32.totalorder %s15, 0
    %p110 = por %p108, %p109
    %p111 = scmp.le.s32.totalorder 1, %s9
    %p112 = scmp.lt.s32.totalorder %s9, 3
    %p113 = pnand %p111, %p112
    %p114 = pneg %p113
    // Predicated region
    $region9: #{_lambda_.4} parent=5 // pred_check
      _
    $region10: #{_lambda_.4} parent=5 // pred_check_branch
      %116 = sbr.rel (%p113) target = $region12
    $region11: #{_lambda_.4} parent=5 // pred_region
      %s117 = ssub.s32 %s9, 1
      // Predicated region
      $region13: #{_lambda_.4} parent=11 // pred_check
        %p118 = pneg %p56
      $region14: #{_lambda_.4} parent=11 // pred_check_branch
        %120 = sbr.rel (%p118) target = $region16
      $region15: #{_lambda_.4} parent=11 // pred_region
        _
      $region16: #{_lambda_.4} parent=11 // pred_fallthru
        _
      // Predicated region
      $region17: #{_lambda_.4} parent=11 // pred_check
        %p121 = pneg %p77
      $region18: #{_lambda_.4} parent=11 // pred_check_branch
        %123 = sbr.rel (%p121) target = $region20
      $region19: #{_lambda_.4} parent=11 // pred_region
        _
      $region20: #{_lambda_.4} parent=11 // pred_fallthru
        _
    $region12: #{_lambda_.4} parent=5 // pred_fallthru
      _
    %p124 = scmp.lt.s32.totalorder %s9, 2
    // Predicated region
    $region21: #{_lambda_.4} parent=5 // pred_check
      %p125 = pneg %p124
    $region22: #{_lambda_.4} parent=5 // pred_check_branch
      %127 = sbr.rel (%p125) target = $region24
    $region23: #{_lambda_.4} parent=5 // pred_region
      // Predicated region
      $region25: #{_lambda_.4} parent=23 // pred_check
        %p128 = pneg %p29
      $region26: #{_lambda_.4} parent=23 // pred_check_branch
        %130 = sbr.rel (%p128) target = $region28
      $region27: #{_lambda_.4} parent=23 // pred_region
        %s131 = smul.u32 4, %s9
        %p132 = scmp.lt.s32.totalorder %s131, 7
        %s133 = scalar_select %p132, %s131, 7
        %s134 = smul.addr %s133, 4
        %s135 = scalar_lea.vmem %s0, %s134
        %s136 = smul.u32 4, %s9
      $region28: #{_lambda_.4} parent=23 // pred_fallthru
        _
    $region24: #{_lambda_.4} parent=5 // pred_fallthru
      _
    %p137 = scmp.le.s32.totalorder 1, %s9
    %p138 = scmp.lt.s32.totalorder %s9, 3
    %p139 = pnand %p137, %p138
    %p140 = pneg %p139
    // Predicated region
    $region29: #{_lambda_.4} parent=5 // pred_check
      _
    $region30: #{_lambda_.4} parent=5 // pred_check_branch
      %142 = sbr.rel (%p139) target = $region32
    $region31: #{_lambda_.4} parent=5 // pred_region
      %s143 = ssub.s32 %s9, 1
      %s144 = smul.u32 4, %s14
      %p145 = scmp.lt.s32.totalorder %s144, 7
      %s146 = scalar_select %p145, %s144, 7
      %s147 = smul.addr %s146, 4
      %s148 = scalar_lea.vmem %s0, %s147
      %p149 = pneg %p35
      %p150 = pneg %p32
      %p151 = pneg %p56
      %p152 = pneg %p53
      %p153 = pneg %p77
      %p154 = pneg %p74
      %p155 = pneg %p103
      %p156 = pneg %p100
      %s157 = smul.u32 4, %s14
      %p158 = scmp.lt.s32.totalorder %s157, 7
      %s159 = scalar_select %p158, %s157, 7
      %s160 = smul.addr %s159, 3
      %s161 = smul.addr %s160, 8
      %s162 = scalar_lea.vmem %s3, %s161
      %s163 = smul.u32 4, %s14
      %p164 = scmp.lt.s32.totalorder %s163, 7
      %s165 = scalar_select %p164, %s163, 7
      %s166 = smul.addr %s165, 4
      %s167 = scalar_lea.vmem %s0, %s166
      %s168 = smul.u32 4, %s14
      %s169 = smul.u32 4, %s14
      %p170 = scmp.lt.s32.totalorder %s169, 7
      %s171 = scalar_select %p170, %s169, 7
      %s172 = smul.addr %s171, 3
      %s173 = smul.addr %s172, 8
      %s174 = scalar_lea.vmem %s3, %s173
      %s175 = smul.u32 4, %s14
      %v177 = vld [vmem:[%s167] sm:$0xf]
      %v178 = vld [vmem:[%s167 + $0x4] sm:$0xf]
      %v179 = vld [vmem:[%s167 + $0x8] sm:$0xf]
      %v180 = vld [vmem:[%s167 + $0xc] sm:$0xf]
      %v181 = vld [vmem:[%s1] sm:$0xff]
      %v182 = vld [vmem:[%s1 + $0x8] sm:$0xf]
      %v183 = vld [vmem:[%s1 + $0xc] sm:$0xff]
      %v184 = vld [vmem:[%s1 + $0x14] sm:$0xf]
      %v185 = vld [vmem:[%s1 + $0x18] sm:$0xff]
      %v186 = vld [vmem:[%s1 + $0x20] sm:$0xf]
      %v187 = vld [vmem:[%s1 + $0x24] sm:$0xff]
      %v188 = vld [vmem:[%s1 + $0x2c] sm:$0xf]
      %v189 = vld [vmem:[%s1 + $0x30] sm:$0xff]
      %v190 = vld [vmem:[%s1 + $0x38] sm:$0xf]
      %v191 = vld [vmem:[%s1 + $0x3c] sm:$0xff]
      %v192 = vld [vmem:[%s1 + $0x44] sm:$0xf]
      %v193 = vld [vmem:[%s1 + $0x48] sm:$0xff]
      %v194 = vld [vmem:[%s1 + $0x50] sm:$0xf]
      %v195 = vld [vmem:[%s1 + $0x54] sm:$0xff]
      %v196 = vld [vmem:[%s1 + $0x5c] sm:$0xf]
      %v197 = vld [vmem:[%s1 + $0x60] sm:$0xff]
      %v198 = vld [vmem:[%s1 + $0x68] sm:$0xf]
      %v199 = vld [vmem:[%s1 + $0x6c] sm:$0xff]
      %v200 = vld [vmem:[%s1 + $0x74] sm:$0xf]
      %v201 = vld [vmem:[%s1 + $0x78] sm:$0xff]
      %v202 = vld [vmem:[%s1 + $0x80] sm:$0xf]
      %v203 = vld [vmem:[%s1 + $0x84] sm:$0xff]
      %v204 = vld [vmem:[%s1 + $0x8c] sm:$0xf]
      %v205 = vld [vmem:[%s1 + $0x90] sm:$0xff]
      %v206 = vld [vmem:[%s1 + $0x98] sm:$0xf]
      %v207 = vld [vmem:[%s1 + $0x9c] sm:$0xff]
      %v208 = vld [vmem:[%s1 + $0xa4] sm:$0xf]
      %v209 = vld [vmem:[%s1 + $0xa8] sm:$0xff]
      %v210 = vld [vmem:[%s1 + $0xb0] sm:$0xf]
      %v211 = vld [vmem:[%s1 + $0xb4] sm:$0xff]
      %v212 = vld [vmem:[%s1 + $0xbc] sm:$0xf]
      %v213 = vld [vmem:[%s2] sm:$0x7]
      %v215 = vlaneseq
      %v216 = vshrl.u32 %v215, 7
      %v217 = vsub.s32 0, %v216
      %v218 = vrot.slane %v213, %v217
      %v219 = vlaneseq
      %v220 = vshrl.u32 %v219, 7
      %v221 = vsub.s32 1, %v220
      %v222 = vrot.slane %v213, %v221
      %v223 = vlaneseq
      %v224 = vshrl.u32 %v223, 7
      %v225 = vsub.s32 2, %v224
      %v226 = vrot.slane %v213, %v225
      %v234 = vunpack.c.l.b16 %v177
      %v235 = vunpack.c.l.b16 %v178
      %v236 = vunpack.c.l.b16 %v179
      %v237 = vunpack.c.l.b16 %v180
      %v238 = vpack.c.b16 %v235, %v234
      %v239 = vpack.c.b16 %v237, %v236
      %v274 = vunpack.c.l.b16 %v181
      %v275 = vunpack.c.h.b16 %v181
      %v276 = vunpack.c.l.b16 %v182
      %v277 = vunpack.c.l.b16 %v183
      %v278 = vunpack.c.h.b16 %v183
      %v279 = vunpack.c.l.b16 %v184
      %v280 = vunpack.c.l.b16 %v185
      %v281 = vunpack.c.h.b16 %v185
      %v282 = vunpack.c.l.b16 %v186
      %v283 = vunpack.c.l.b16 %v187
      %v284 = vunpack.c.h.b16 %v187
      %v285 = vunpack.c.l.b16 %v188
      %v286 = vunpack.c.l.b16 %v189
      %v287 = vunpack.c.h.b16 %v189
      %v288 = vunpack.c.l.b16 %v190
      %v289 = vunpack.c.l.b16 %v191
      %v290 = vunpack.c.h.b16 %v191
      %v291 = vunpack.c.l.b16 %v192
      %v292 = vunpack.c.l.b16 %v193
      %v293 = vunpack.c.h.b16 %v193
      %v294 = vunpack.c.l.b16 %v194
      %v295 = vunpack.c.l.b16 %v195
      %v296 = vunpack.c.h.b16 %v195
      %v297 = vunpack.c.l.b16 %v196
      %v298 = vunpack.c.l.b16 %v197
      %v299 = vunpack.c.h.b16 %v197
      %v300 = vunpack.c.l.b16 %v198
      %v301 = vunpack.c.l.b16 %v199
      %v302 = vunpack.c.h.b16 %v199
      %v303 = vunpack.c.l.b16 %v200
      %v304 = vunpack.c.l.b16 %v201
      %v305 = vunpack.c.h.b16 %v201
      %v306 = vunpack.c.l.b16 %v202
      %v307 = vunpack.c.l.b16 %v203
      %v308 = vunpack.c.h.b16 %v203
      %v309 = vunpack.c.l.b16 %v204
      %v310 = vunpack.c.l.b16 %v205
      %v311 = vunpack.c.h.b16 %v205
      %v312 = vunpack.c.l.b16 %v206
      %v313 = vunpack.c.l.b16 %v207
      %v314 = vunpack.c.h.b16 %v207
      %v315 = vunpack.c.l.b16 %v208
      %v316 = vunpack.c.l.b16 %v209
      %v317 = vunpack.c.h.b16 %v209
      %v318 = vunpack.c.l.b16 %v210
      %v319 = vunpack.c.l.b16 %v211
      %v320 = vunpack.c.h.b16 %v211
      %v321 = vunpack.c.l.b16 %v212
      %v322 = vpack.c.b16 %v277, %v274
      %v323 = vpack.c.b16 %v278, %v275
      %v324 = vpack.c.b16 %v279, %v276
      %v325 = vpack.c.b16 %v283, %v280
      %v326 = vpack.c.b16 %v284, %v281
      %v327 = vpack.c.b16 %v285, %v282
      %v328 = vpack.c.b16 %v289, %v286
      %v329 = vpack.c.b16 %v290, %v287
      %v330 = vpack.c.b16 %v291, %v288
      %v331 = vpack.c.b16 %v295, %v292
      %v332 = vpack.c.b16 %v296, %v293
      %v333 = vpack.c.b16 %v297, %v294
      %v334 = vpack.c.b16 %v301, %v298
      %v335 = vpack.c.b16 %v302, %v299
      %v336 = vpack.c.b16 %v303, %v300
      %v337 = vpack.c.b16 %v307, %v304
      %v338 = vpack.c.b16 %v308, %v305
      %v339 = vpack.c.b16 %v309, %v306
      %v340 = vpack.c.b16 %v313, %v310
      %v341 = vpack.c.b16 %v314, %v311
      %v342 = vpack.c.b16 %v315, %v312
      %v343 = vpack.c.b16 %v319, %v316
      %v344 = vpack.c.b16 %v320, %v317
      %v345 = vpack.c.b16 %v321, %v318
      %370 = vmatprep.subr.bf16.mxu0 %v344
      %371 = vmatpush1.bf16.msra.mxu0 %v343
      %372 = vmatprep.subr.bf16.mxu0 %v341
      %373 = vmatpush1.bf16.msra.mxu0 %v340
      %374 = vmatprep.subr.bf16.mxu0 %v338
      %375 = vmatpush1.bf16.msra.mxu0 %v337
      %376 = vmatprep.subr.bf16.mxu0 %v335
      %377 = vmatpush1.bf16.msra.mxu0 %v334
      %378 = vmatprep.subr.bf16.mxu0 %v332
      %379 = vmatpush1.bf16.msra.mxu0 %v331
      %380 = vmatprep.subr.bf16.mxu0 %v329
      %381 = vmatpush1.bf16.msra.mxu0 %v328
      %382 = vmatprep.subr.bf16.mxu0 %v326
      %383 = vmatpush1.bf16.msra.mxu0 %v325
      %384 = vmatprep.subr.bf16.mxu0 %v323
      %385 = vmatpush1.bf16.msra.mxu0 %v322
      %386 = vmatprep.subr.bf16.mxu0 0
      %387 = vmatpush2.bf16.msra.mxu0 0
      %388 = vmatprep.subr.bf16.mxu0 0
      %389 = vmatpush2.bf16.msra.mxu0 0
      %390 = vmatprep.subr.bf16.mxu0 0
      %391 = vmatpush2.bf16.msra.mxu0 0
      %392 = vmatprep.subr.bf16.mxu0 0
      %393 = vmatpush2.bf16.msra.mxu0 0
      %394 = vmatprep.subr.bf16.mxu0 0
      %395 = vmatpush2.bf16.msra.mxu0 0
      %396 = vmatprep.subr.bf16.mxu0 0
      %397 = vmatpush2.bf16.msra.mxu0 0
      %398 = vmatprep.subr.bf16.mxu0 0
      %399 = vmatpush2.bf16.msra.mxu0 0
      %400 = vmatprep.subr.bf16.mxu0 0
      %401 = vmatpush2.bf16.msra.mxu0 0
      %402 = vmatprep.mubr.bf16.mxu0 0
      %403 = vmatmul.mubr.bf16.gmra.mxu0 %v238
      %v404 = vpop.f32.mrf.mxu0
      %v405 = vadd.f32 %v218, %v404
      %v406 = vpop.f32.mrf.mxu0
      %v407 = vadd.f32 %v222, %v406
      %v408 = vpop.f32.mrf.mxu0
      %v409 = vadd.f32 %v218, %v408
      %v410 = vpop.f32.mrf.mxu0
      %v411 = vadd.f32 %v222, %v410
      %412 = vmatprep.mubr.bf16.mxu0 0
      %413 = vmatmul.mubr.bf16.gmra.mxu0 %v239
      %v414 = vpop.f32.mrf.mxu0
      %v415 = vadd.f32 %v218, %v414
      %v416 = vpop.f32.mrf.mxu0
      %v417 = vadd.f32 %v222, %v416
      %v418 = vpop.f32.mrf.mxu0
      %v419 = vadd.f32 %v218, %v418
      %v420 = vpop.f32.mrf.mxu0
      %v421 = vadd.f32 %v222, %v420
      %422 = vdwg.mxu0
      %423 = vmatprep.subr.bf16.mxu0 0
      %424 = vmatpush1.bf16.msra.mxu0 %v345
      %425 = vmatprep.subr.bf16.mxu0 0
      %426 = vmatpush1.bf16.msra.mxu0 %v342
      %427 = vmatprep.subr.bf16.mxu0 0
      %428 = vmatpush1.bf16.msra.mxu0 %v339
      %429 = vmatprep.subr.bf16.mxu0 0
      %430 = vmatpush1.bf16.msra.mxu0 %v336
      %431 = vmatprep.subr.bf16.mxu0 0
      %432 = vmatpush1.bf16.msra.mxu0 %v333
      %433 = vmatprep.subr.bf16.mxu0 0
      %434 = vmatpush1.bf16.msra.mxu0 %v330
      %435 = vmatprep.subr.bf16.mxu0 0
      %436 = vmatpush1.bf16.msra.mxu0 %v327
      %437 = vmatprep.subr.bf16.mxu0 0
      %438 = vmatpush1.bf16.msra.mxu0 %v324
      %439 = vmatprep.subr.bf16.mxu0 0
      %440 = vmatpush2.bf16.msra.mxu0 0
      %441 = vmatprep.subr.bf16.mxu0 0
      %442 = vmatpush2.bf16.msra.mxu0 0
      %443 = vmatprep.subr.bf16.mxu0 0
      %444 = vmatpush2.bf16.msra.mxu0 0
      %445 = vmatprep.subr.bf16.mxu0 0
      %446 = vmatpush2.bf16.msra.mxu0 0
      %447 = vmatprep.subr.bf16.mxu0 0
      %448 = vmatpush2.bf16.msra.mxu0 0
      %449 = vmatprep.subr.bf16.mxu0 0
      %450 = vmatpush2.bf16.msra.mxu0 0
      %451 = vmatprep.subr.bf16.mxu0 0
      %452 = vmatpush2.bf16.msra.mxu0 0
      %453 = vmatprep.subr.bf16.mxu0 0
      %454 = vmatpush2.bf16.msra.mxu0 0
      %455 = vmatprep.mubr.bf16.mxu0 0
      %456 = vmatmul.mubr.bf16.gmra.mxu0 %v238
      %v457 = vpop.f32.mrf.mxu0
      %v458 = vadd.f32 %v226, %v457
      %v459 = vpop.f32.mrf.mxu0
      %v460 = vpop.f32.mrf.mxu0
      %v461 = vadd.f32 %v226, %v460
      %v462 = vpop.f32.mrf.mxu0
      %463 = vmatprep.mubr.bf16.mxu0 0
      %464 = vmatmul.mubr.bf16.gmra.mxu0 %v239
      %v465 = vpop.f32.mrf.mxu0
      %v466 = vadd.f32 %v226, %v465
      %v467 = vpop.f32.mrf.mxu0
      %v468 = vpop.f32.mrf.mxu0
      %v469 = vadd.f32 %v226, %v468
      %v470 = vpop.f32.mrf.mxu0
      %471 = vdwg.mxu0
      %472 = vst [vmem:[%s174] sm:$0xff] %v405
      %473 = vst [vmem:[%s174 + $0x8] sm:$0xff] %v407
      %474 = vst [vmem:[%s174 + $0x10] sm:$0xff] %v458
      %475 = vst [vmem:[%s174 + $0x18] sm:$0xff] %v409
      %476 = vst [vmem:[%s174 + $0x20] sm:$0xff] %v411
      %477 = vst [vmem:[%s174 + $0x28] sm:$0xff] %v461
      %478 = vst [vmem:[%s174 + $0x30] sm:$0xff] %v415
      %479 = vst [vmem:[%s174 + $0x38] sm:$0xff] %v417
      %480 = vst [vmem:[%s174 + $0x40] sm:$0xff] %v466
      %481 = vst [vmem:[%s174 + $0x48] sm:$0xff] %v419
      %482 = vst [vmem:[%s174 + $0x50] sm:$0xff] %v421
      %483 = vst [vmem:[%s174 + $0x58] sm:$0xff] %v469
      %s484 = smul.u32 4, %s14
      %p485 = scmp.lt.s32.totalorder %s484, 7
      %s486 = scalar_select %p485, %s484, 7
      %s487 = smul.addr %s486, 3
      %s488 = smul.addr %s487, 8
      %s489 = scalar_lea.vmem %s3, %s488
      // Predicated region
      $region33: #{_lambda_.4} parent=31 // pred_check
        %p490 = pneg %p100
      $region34: #{_lambda_.4} parent=31 // pred_check_branch
        %492 = sbr.rel (%p490) target = $region36
      $region35: #{_lambda_.4} parent=31 // pred_region
        %s493 = smul.u32 4, %s14
      $region36: #{_lambda_.4} parent=31 // pred_fallthru
        _
    $region32: #{_lambda_.4} parent=5 // pred_fallthru
      _
    %p494 = scmp.le.s32.totalorder 2, %s9
    // Predicated region
    $region37: #{_lambda_.4} parent=5 // pred_check
      %p495 = pneg %p494
    $region38: #{_lambda_.4} parent=5 // pred_check_branch
      %497 = sbr.rel (%p495) target = $region40
    $region39: #{_lambda_.4} parent=5 // pred_region
      %s498 = ssub.s32 %s9, 2
      // Predicated region
      $region41: #{_lambda_.4} parent=39 // pred_check
        %p499 = pneg %p106
      $region42: #{_lambda_.4} parent=39 // pred_check_branch
        %501 = sbr.rel (%p499) target = $region44
      $region43: #{_lambda_.4} parent=39 // pred_region
        %s502 = smul.u32 4, %s15
        %p503 = scmp.lt.s32.totalorder %s502, 7
        %s504 = scalar_select %p503, %s502, 7
        %s505 = smul.addr %s504, 3
        %s506 = smul.addr %s505, 8
        %s507 = scalar_lea.vmem %s3, %s506
      $region44: #{_lambda_.4} parent=39 // pred_fallthru
        _
    $region40: #{_lambda_.4} parent=5 // pred_fallthru
      _
  $region6: #{_lambda_.4} parent=0 // loop_footer
    %s13 = sadd.s32 1, %s9
  $region7: #{_lambda_.4} parent=0 // loop_footer_branch
    %8 = sbr.rel target = $region3
  $region8: #{_lambda_.4} parent=0 // loop_exit
    _

// kernel: _lambda_.5
$region0: #{_lambda_.5}
  #allocation0 [shape = 'u32[]', space=smem, size = 0x4, offset = 0x4, fixed_abs, tag = 'smem constant byte address 0x4 - core index']
  #allocation1 [shape = 'u32[144,128]{1,0:T(1,128)}', space=vmem, size = 0x12000, scoped, tag = 'internal scratch']
  #allocation2 [shape = 'f32[8,128]{1,0:T(8,128)}', space=vmem, size = 0x1000, scoped, tag = 'scratch operand']
  %s0 = inlined_call_operand.vmem [shape: f32[8,8,384], index: 0, kind: input, shape index: {}]
  %s1 = inlined_call_operand.vmem [shape: bf16[128,384], index: 1, kind: input, shape index: {}]
  %s2 = inlined_call_operand.vmem [shape: f32[1,128], index: 2, kind: input, shape index: {}]
  %s3 = inlined_call_operand.vmem [shape: f32[8,8,128], index: 3, kind: output, shape index: {}]
  %s4 = sld [smem:[#allocation0]]
  $region49: #{_lambda_.5} parent=0
    _
  %s6 = ssub.s32 1, %s4
  %s7 = scalar_select 0, %s6, %s4
  loop: start=0, step=1, limit=4
  $region2: #{_lambda_.5} parent=0 // loop_pre_header
    _
  $region3: #{_lambda_.5} parent=0 // loop_header
    %s9 = sphi 0, %s13
    %p10 = scmp.ge.s32.totalorder %s9, 4
    %s16 = sphi 0, %s28
    %s17 = sphi 0, %s24
    %s18 = sphi 0, %s16
    %s19 = sphi 0, %s17
    %s20 = sphi 0, %s18
    %s21 = sphi 0, %s19
    %s33 = sphi 0, %s35
    %s36 = sphi 0, %s33
    %s37 = sphi 0, %s36
    %s53 = sphi 0, %s37
    %s57 = sphi 0, %s57
    %s59 = sphi 0, %s57
    %s60 = sphi 0, %s59
    %s74 = sphi 0, %s60
    %s78 = sphi 0, %s78
    %s80 = sphi 0, %s78
    %s81 = sphi 0, %s80
    %s95 = sphi 0, %s81
    %s103 = sphi 0, %s105
    %s106 = sphi 0, %s103
    %s107 = sphi 0, %s106
    %s123 = sphi 0, %s107
  $region4: #{_lambda_.5} parent=0 // loop_header_branch
    %12 = sbr.rel (%p10) target = $region8
  $region5: #{_lambda_.5} parent=0 // loop_body
    %s14 = ssub.s32 %s9, 1
    %s15 = ssub.s32 %s9, 2
    %s22 = sadd.s32 1, %s17
    %p23 = scmp.ge.s32.totalorder %s22, 2
    %s24 = scalar_select %p23, 0, %s22
    %s25 = sadd.s32 1, %s16
    %s26 = scalar_select %p23, %s25, %s16
    %p27 = scmp.ge.s32.totalorder %s26, 1
    %s28 = scalar_select %p27, 0, %s26
    %s29 = ssub.s32 %s17, %s24
    %s30 = ssub.s32 %s16, %s28
    %s31 = sor.u32 %s29, %s30
    %p32 = scmp.eq.s32.totalorder %s31, 0
    %s34 = sadd.s32 %s33, 1
    %s35 = scalar_select %p32, %s33, %s34
    %p38 = pneg %p32
    %p39 = scmp.eq.s32.totalorder %s9, 1
    %p40 = por %p38, %p39
    %p41 = scmp.ne.s32.totalorder %s33, %s36
    %p42 = scmp.eq.s32.totalorder %s9, 0
    %p43 = por %p41, %p42
    %p44 = scmp.ne.s32.totalorder %s33, %s36
    %p45 = scmp.eq.s32.totalorder %s14, 1
    %p46 = por %p44, %p45
    %p47 = scmp.ne.s32.totalorder %s36, %s37
    %p48 = scmp.eq.s32.totalorder %s14, 0
    %p49 = por %p47, %p48
    %p50 = scmp.ne.s32.totalorder %s36, %s37
    %p51 = scmp.eq.s32.totalorder %s15, 1
    %p52 = por %p50, %p51
    %p54 = scmp.ne.s32.totalorder %s37, %s53
    %p55 = scmp.eq.s32.totalorder %s15, 0
    %p56 = por %p54, %p55
    %s58 = sadd.s32 %s57, 1
    %p61 = scmp.eq.s32.totalorder %s9, 1
    %p62 = scmp.ne.s32.totalorder %s57, %s59
    %p63 = scmp.eq.s32.totalorder %s9, 0
    %p64 = por %p62, %p63
    %p65 = scmp.ne.s32.totalorder %s57, %s59
    %p66 = scmp.eq.s32.totalorder %s14, 1
    %p67 = por %p65, %p66
    %p68 = scmp.ne.s32.totalorder %s59, %s60
    %p69 = scmp.eq.s32.totalorder %s14, 0
    %p70 = por %p68, %p69
    %p71 = scmp.ne.s32.totalorder %s59, %s60
    %p72 = scmp.eq.s32.totalorder %s15, 1
    %p73 = por %p71, %p72
    %p75 = scmp.ne.s32.totalorder %s60, %s74
    %p76 = scmp.eq.s32.totalorder %s15, 0
    %p77 = por %p75, %p76
    %s79 = sadd.s32 %s78, 1
    %p82 = scmp.eq.s32.totalorder %s9, 1
    %p83 = scmp.ne.s32.totalorder %s78, %s80
    %p84 = scmp.eq.s32.totalorder %s9, 0
    %p85 = por %p83, %p84
    %p86 = scmp.ne.s32.totalorder %s78, %s80
    %p87 = scmp.eq.s32.totalorder %s14, 1
    %p88 = por %p86, %p87
    %p89 = scmp.ne.s32.totalorder %s80, %s81
    %p90 = scmp.eq.s32.totalorder %s14, 0
    %p91 = por %p89, %p90
    %p92 = scmp.ne.s32.totalorder %s80, %s81
    %p93 = scmp.eq.s32.totalorder %s15, 1
    %p94 = por %p92, %p93
    %p96 = scmp.ne.s32.totalorder %s81, %s95
    %p97 = scmp.eq.s32.totalorder %s15, 0
    %p98 = por %p96, %p97
    %s99 = ssub.s32 %s17, %s24
    %s100 = ssub.s32 %s16, %s28
    %s101 = sor.u32 %s99, %s100
    %p102 = scmp.eq.s32.totalorder %s101, 0
    %s104 = sadd.s32 %s103, 1
    %s105 = scalar_select %p102, %s103, %s104
    %p108 = pneg %p102
    %p109 = scmp.eq.s32.totalorder %s9, 1
    %p110 = por %p108, %p109
    %p111 = scmp.ne.s32.totalorder %s103, %s106
    %p112 = scmp.eq.s32.totalorder %s9, 0
    %p113 = por %p111, %p112
    %p114 = scmp.ne.s32.totalorder %s103, %s106
    %p115 = scmp.eq.s32.totalorder %s14, 1
    %p116 = por %p114, %p115
    %p117 = scmp.ne.s32.totalorder %s106, %s107
    %p118 = scmp.eq.s32.totalorder %s14, 0
    %p119 = por %p117, %p118
    %p120 = scmp.ne.s32.totalorder %s106, %s107
    %p121 = scmp.eq.s32.totalorder %s15, 1
    %p122 = por %p120, %p121
    %p124 = scmp.ne.s32.totalorder %s107, %s123
    %p125 = scmp.eq.s32.totalorder %s15, 0
    %p126 = por %p124, %p125
    %p127 = scmp.le.s32.totalorder 1, %s9
    %p128 = scmp.lt.s32.totalorder %s9, 3
    %p129 = pnand %p127, %p128
    %p130 = pneg %p129
    // Predicated region
    $region9: #{_lambda_.5} parent=5 // pred_check
      _
    $region10: #{_lambda_.5} parent=5 // pred_check_branch
      %132 = sbr.rel (%p129) target = $region12
    $region11: #{_lambda_.5} parent=5 // pred_region
      %s133 = ssub.s32 %s9, 1
      // Predicated region
      $region13: #{_lambda_.5} parent=11 // pred_check
        %p134 = pneg %p70
      $region14: #{_lambda_.5} parent=11 // pred_check_branch
        %136 = sbr.rel (%p134) target = $region16
      $region15: #{_lambda_.5} parent=11 // pred_region
        _
      $region16: #{_lambda_.5} parent=11 // pred_fallthru
        _
      // Predicated region
      $region17: #{_lambda_.5} parent=11 // pred_check
        %p137 = pneg %p91
      $region18: #{_lambda_.5} parent=11 // pred_check_branch
        %139 = sbr.rel (%p137) target = $region20
      $region19: #{_lambda_.5} parent=11 // pred_region
        _
      $region20: #{_lambda_.5} parent=11 // pred_fallthru
        _
    $region12: #{_lambda_.5} parent=5 // pred_fallthru
      _
    %p140 = scmp.lt.s32.totalorder %s9, 2
    // Predicated region
    $region21: #{_lambda_.5} parent=5 // pred_check
      %p141 = pneg %p140
    $region22: #{_lambda_.5} parent=5 // pred_check_branch
      %143 = sbr.rel (%p141) target = $region24
    $region23: #{_lambda_.5} parent=5 // pred_region
      // Predicated region
      $region25: #{_lambda_.5} parent=23 // pred_check
        %p144 = pneg %p43
      $region26: #{_lambda_.5} parent=23 // pred_check_branch
        %146 = sbr.rel (%p144) target = $region28
      $region27: #{_lambda_.5} parent=23 // pred_region
        %s147 = smul.u32 4, %s17
        %p148 = scmp.lt.s32.totalorder %s147, 7
        %s149 = scalar_select %p148, %s147, 7
        %p150 = scmp.lt.s32.totalorder %s16, 0
        %s151 = scalar_select %p150, %s16, 0
        %s152 = smul.addr %s151, 3
        %s153 = smul.addr %s149, 3
        %s154 = sadd.s32 %s152, %s153
        %s155 = smul.addr %s154, 8
        %s156 = scalar_lea.vmem %s0, %s155
        %s157 = smul.u32 4, %s17
      $region28: #{_lambda_.5} parent=23 // pred_fallthru
        _
    $region24: #{_lambda_.5} parent=5 // pred_fallthru
      _
    %p158 = scmp.le.s32.totalorder 1, %s9
    %p159 = scmp.lt.s32.totalorder %s9, 3
    %p160 = pnand %p158, %p159
    %p161 = pneg %p160
    // Predicated region
    $region29: #{_lambda_.5} parent=5 // pred_check
      _
    $region30: #{_lambda_.5} parent=5 // pred_check_branch
      %163 = sbr.rel (%p160) target = $region32
    $region31: #{_lambda_.5} parent=5 // pred_region
      %s164 = ssub.s32 %s9, 1
      %s165 = smul.u32 4, %s19
      %p166 = scmp.lt.s32.totalorder %s165, 7
      %s167 = scalar_select %p166, %s165, 7
      %p168 = scmp.lt.s32.totalorder %s18, 0
      %s169 = scalar_select %p168, %s18, 0
      %s170 = smul.addr %s169, 3
      %s171 = smul.addr %s167, 3
      %s172 = sadd.s32 %s170, %s171
      %s173 = smul.addr %s172, 8
      %s174 = scalar_lea.vmem %s0, %s173
      %p175 = pneg %p49
      %p176 = pneg %p46
      %p177 = pneg %p70
      %p178 = pneg %p67
      %p179 = pneg %p91
      %p180 = pneg %p88
      %p181 = pneg %p119
      %p182 = pneg %p116
      %s183 = smul.u32 4, %s19
      %p184 = scmp.lt.s32.totalorder %s183, 7
      %s185 = scalar_select %p184, %s183, 7
      %p186 = scmp.lt.s32.totalorder %s18, 0
      %s187 = scalar_select %p186, %s18, 0
      %s188 = sadd.s32 %s187, %s185
      %s189 = smul.addr %s188, 8
      %s190 = scalar_lea.vmem %s3, %s189
      %s191 = smul.u32 4, %s19
      %p192 = scmp.lt.s32.totalorder %s191, 7
      %s193 = scalar_select %p192, %s191, 7
      %p194 = scmp.lt.s32.totalorder %s18, 0
      %s195 = scalar_select %p194, %s18, 0
      %s196 = smul.addr %s195, 3
      %s197 = smul.addr %s193, 3
      %s198 = sadd.s32 %s196, %s197
      %s199 = smul.addr %s198, 8
      %s200 = scalar_lea.vmem %s0, %s199
      %s201 = smul.u32 4, %s19
      %s202 = smul.u32 4, %s19
      %p203 = scmp.lt.s32.totalorder %s202, 7
      %s204 = scalar_select %p203, %s202, 7
      %p205 = scmp.lt.s32.totalorder %s18, 0
      %s206 = scalar_select %p205, %s18, 0
      %s207 = sadd.s32 %s206, %s204
      %s208 = smul.addr %s207, 8
      %s209 = scalar_lea.vmem %s3, %s208
      %s210 = smul.u32 4, %s19
      %p212 = scmp.eq.s32.totalorder %s19, 0
      // Predicated region
      $region33: #{_lambda_.5} parent=31 // pred_check
        %p213 = pneg %p212
      $region34: #{_lambda_.5} parent=31 // pred_check_branch
        %215 = sbr.rel (%p213) target = $region36
      $region35: #{_lambda_.5} parent=31 // pred_region
        %216 = vst [vmem:[#allocation2] sm:$0xff] 0.0
      $region36: #{_lambda_.5} parent=31 // pred_fallthru
        _
      %v217 = vld [vmem:[%s2] sm:$0x1]
      %v219 = vlaneseq
      %v220 = vshrl.u32 %v219, 7
      %v221 = vsub.s32 0, %v220
      %v222 = vrot.slane %v217, %v221
      %v224 = vld [vmem:[#allocation2] sm:$0xff]
      %v225 = vpack.c.bf16 %v224, %v224
      %v226 = vld [vmem:[%s1] sm:$0xff]
      %v227 = vld [vmem:[%s1 + $0x8] sm:$0xf]
      %v228 = vld [vmem:[%s1 + $0xc] sm:$0xff]
      %v229 = vld [vmem:[%s1 + $0x14] sm:$0xf]
      %v230 = vld [vmem:[%s1 + $0x18] sm:$0xff]
      %v231 = vld [vmem:[%s1 + $0x20] sm:$0xf]
      %v232 = vld [vmem:[%s1 + $0x24] sm:$0xff]
      %v233 = vld [vmem:[%s1 + $0x2c] sm:$0xf]
      %v234 = vld [vmem:[%s1 + $0x30] sm:$0xff]
      %v235 = vld [vmem:[%s1 + $0x38] sm:$0xf]
      %v236 = vld [vmem:[%s1 + $0x3c] sm:$0xff]
      %v237 = vld [vmem:[%s1 + $0x44] sm:$0xf]
      %v238 = vld [vmem:[%s1 + $0x48] sm:$0xff]
      %v239 = vld [vmem:[%s1 + $0x50] sm:$0xf]
      %v240 = vld [vmem:[%s1 + $0x54] sm:$0xff]
      %v241 = vld [vmem:[%s1 + $0x5c] sm:$0xf]
      %v242 = vld [vmem:[%s1 + $0x60] sm:$0xff]
      %v243 = vld [vmem:[%s1 + $0x68] sm:$0xf]
      %v244 = vld [vmem:[%s1 + $0x6c] sm:$0xff]
      %v245 = vld [vmem:[%s1 + $0x74] sm:$0xf]
      %v246 = vld [vmem:[%s1 + $0x78] sm:$0xff]
      %v247 = vld [vmem:[%s1 + $0x80] sm:$0xf]
      %v248 = vld [vmem:[%s1 + $0x84] sm:$0xff]
      %v249 = vld [vmem:[%s1 + $0x8c] sm:$0xf]
      %v250 = vld [vmem:[%s1 + $0x90] sm:$0xff]
      %v251 = vld [vmem:[%s1 + $0x98] sm:$0xf]
      %v252 = vld [vmem:[%s1 + $0x9c] sm:$0xff]
      %v253 = vld [vmem:[%s1 + $0xa4] sm:$0xf]
      %v254 = vld [vmem:[%s1 + $0xa8] sm:$0xff]
      %v255 = vld [vmem:[%s1 + $0xb0] sm:$0xf]
      %v256 = vld [vmem:[%s1 + $0xb4] sm:$0xff]
      %v257 = vld [vmem:[%s1 + $0xbc] sm:$0xf]
      %v290 = vunpack.c.l.b16 %v226
      %v291 = vunpack.c.h.b16 %v226
      %v292 = vunpack.c.l.b16 %v227
      %v293 = vunpack.c.l.b16 %v228
      %v294 = vunpack.c.h.b16 %v228
      %v295 = vunpack.c.l.b16 %v229
      %v296 = vunpack.c.l.b16 %v230
      %v297 = vunpack.c.h.b16 %v230
      %v298 = vunpack.c.l.b16 %v231
      %v299 = vunpack.c.l.b16 %v232
      %v300 = vunpack.c.h.b16 %v232
      %v301 = vunpack.c.l.b16 %v233
      %v302 = vunpack.c.l.b16 %v234
      %v303 = vunpack.c.h.b16 %v234
      %v304 = vunpack.c.l.b16 %v235
      %v305 = vunpack.c.l.b16 %v236
      %v306 = vunpack.c.h.b16 %v236
      %v307 = vunpack.c.l.b16 %v237
      %v308 = vunpack.c.l.b16 %v238
      %v309 = vunpack.c.h.b16 %v238
      %v310 = vunpack.c.l.b16 %v239
      %v311 = vunpack.c.l.b16 %v240
      %v312 = vunpack.c.h.b16 %v240
      %v313 = vunpack.c.l.b16 %v241
      %v314 = vunpack.c.l.b16 %v242
      %v315 = vunpack.c.h.b16 %v242
      %v316 = vunpack.c.l.b16 %v243
      %v317 = vunpack.c.l.b16 %v244
      %v318 = vunpack.c.h.b16 %v244
      %v319 = vunpack.c.l.b16 %v245
      %v320 = vunpack.c.l.b16 %v246
      %v321 = vunpack.c.h.b16 %v246
      %v322 = vunpack.c.l.b16 %v247
      %v323 = vunpack.c.l.b16 %v248
      %v324 = vunpack.c.h.b16 %v248
      %v325 = vunpack.c.l.b16 %v249
      %v326 = vunpack.c.l.b16 %v250
      %v327 = vunpack.c.h.b16 %v250
      %v328 = vunpack.c.l.b16 %v251
      %v329 = vunpack.c.l.b16 %v252
      %v330 = vunpack.c.h.b16 %v252
      %v331 = vunpack.c.l.b16 %v253
      %v332 = vunpack.c.l.b16 %v254
      %v333 = vunpack.c.h.b16 %v254
      %v334 = vunpack.c.l.b16 %v255
      %v335 = vunpack.c.l.b16 %v256
      %v336 = vunpack.c.h.b16 %v256
      %v337 = vunpack.c.l.b16 %v257
      %v338 = vpack.c.b16 %v293, %v290
      %v339 = vpack.c.b16 %v294, %v291
      %v340 = vpack.c.b16 %v295, %v292
      %v341 = vpack.c.b16 %v299, %v296
      %v342 = vpack.c.b16 %v300, %v297
      %v343 = vpack.c.b16 %v301, %v298
      %v344 = vpack.c.b16 %v305, %v302
      %v345 = vpack.c.b16 %v306, %v303
      %v346 = vpack.c.b16 %v307, %v304
      %v347 = vpack.c.b16 %v311, %v308
      %v348 = vpack.c.b16 %v312, %v309
      %v349 = vpack.c.b16 %v313, %v310
      %v350 = vpack.c.b16 %v317, %v314
      %v351 = vpack.c.b16 %v318, %v315
      %v352 = vpack.c.b16 %v319, %v316
      %v353 = vpack.c.b16 %v323, %v320
      %v354 = vpack.c.b16 %v324, %v321
      %v355 = vpack.c.b16 %v325, %v322
      %v356 = vpack.c.b16 %v329, %v326
      %v357 = vpack.c.b16 %v330, %v327
      %v358 = vpack.c.b16 %v331, %v328
      %v359 = vpack.c.b16 %v335, %v332
      %v360 = vpack.c.b16 %v336, %v333
      %v361 = vpack.c.b16 %v337, %v334
      %386 = vmatprep.subr.bf16.mxu0 %v360
      %387 = vmatpush1.bf16.msra.mxu0 %v359
      %388 = vmatprep.subr.bf16.mxu0 %v357
      %389 = vmatpush1.bf16.msra.mxu0 %v356
      %390 = vmatprep.subr.bf16.mxu0 %v354
      %391 = vmatpush1.bf16.msra.mxu0 %v353
      %392 = vmatprep.subr.bf16.mxu0 %v351
      %393 = vmatpush1.bf16.msra.mxu0 %v350
      %394 = vmatprep.subr.bf16.mxu0 %v348
      %395 = vmatpush1.bf16.msra.mxu0 %v347
      %396 = vmatprep.subr.bf16.mxu0 %v345
      %397 = vmatpush1.bf16.msra.mxu0 %v344
      %398 = vmatprep.subr.bf16.mxu0 %v342
      %399 = vmatpush1.bf16.msra.mxu0 %v341
      %400 = vmatprep.subr.bf16.mxu0 %v339
      %401 = vmatpush1.bf16.msra.mxu0 %v338
      %402 = vmatprep.subr.bf16.mxu0 0
      %403 = vmatpush2.bf16.msra.mxu0 0
      %404 = vmatprep.subr.bf16.mxu0 0
      %405 = vmatpush2.bf16.msra.mxu0 0
      %406 = vmatprep.subr.bf16.mxu0 0
      %407 = vmatpush2.bf16.msra.mxu0 0
      %408 = vmatprep.subr.bf16.mxu0 0
      %409 = vmatpush2.bf16.msra.mxu0 0
      %410 = vmatprep.subr.bf16.mxu0 0
      %411 = vmatpush2.bf16.msra.mxu0 0
      %412 = vmatprep.subr.bf16.mxu0 0
      %413 = vmatpush2.bf16.msra.mxu0 0
      %414 = vmatprep.subr.bf16.mxu0 0
      %415 = vmatpush2.bf16.msra.mxu0 0
      %416 = vmatprep.subr.bf16.mxu0 0
      %417 = vmatpush2.bf16.msra.mxu0 0
      %418 = vmatprep.mubr.bf16.mxu0 0
      %419 = vmatmul.mubr.bf16.gmra.mxu0 %v225
      %v420 = vpop.f32.mrf.mxu0
      %v421 = vadd.f32 0.0, %v420
      %v422 = vpop.f32.mrf.mxu0
      %v423 = vadd.f32 0.0, %v422
      %v424 = vpop.f32.mrf.mxu0
      %v425 = vpop.f32.mrf.mxu0
      %426 = vdwg.mxu0
      %427 = vmatprep.subr.bf16.mxu0 0
      %428 = vmatpush1.bf16.msra.mxu0 %v361
      %429 = vmatprep.subr.bf16.mxu0 0
      %430 = vmatpush1.bf16.msra.mxu0 %v358
      %431 = vmatprep.subr.bf16.mxu0 0
      %432 = vmatpush1.bf16.msra.mxu0 %v355
      %433 = vmatprep.subr.bf16.mxu0 0
      %434 = vmatpush1.bf16.msra.mxu0 %v352
      %435 = vmatprep.subr.bf16.mxu0 0
      %436 = vmatpush1.bf16.msra.mxu0 %v349
      %437 = vmatprep.subr.bf16.mxu0 0
      %438 = vmatpush1.bf16.msra.mxu0 %v346
      %439 = vmatprep.subr.bf16.mxu0 0
      %440 = vmatpush1.bf16.msra.mxu0 %v343
      %441 = vmatprep.subr.bf16.mxu0 0
      %442 = vmatpush1.bf16.msra.mxu0 %v340
      %443 = vmatprep.subr.bf16.mxu0 0
      %444 = vmatpush2.bf16.msra.mxu0 0
      %445 = vmatprep.subr.bf16.mxu0 0
      %446 = vmatpush2.bf16.msra.mxu0 0
      %447 = vmatprep.subr.bf16.mxu0 0
      %448 = vmatpush2.bf16.msra.mxu0 0
      %449 = vmatprep.subr.bf16.mxu0 0
      %450 = vmatpush2.bf16.msra.mxu0 0
      %451 = vmatprep.subr.bf16.mxu0 0
      %452 = vmatpush2.bf16.msra.mxu0 0
      %453 = vmatprep.subr.bf16.mxu0 0
      %454 = vmatpush2.bf16.msra.mxu0 0
      %455 = vmatprep.subr.bf16.mxu0 0
      %456 = vmatpush2.bf16.msra.mxu0 0
      %457 = vmatprep.subr.bf16.mxu0 0
      %458 = vmatpush2.bf16.msra.mxu0 0
      %459 = vmatprep.mubr.bf16.mxu0 0
      %460 = vmatmul.mubr.bf16.gmra.mxu0 %v225
      %v461 = vpop.f32.mrf.mxu0
      %v462 = vadd.f32 0.0, %v461
      %v463 = vpop.f32.mrf.mxu0
      %v464 = vpop.f32.mrf.mxu0
      %v465 = vpop.f32.mrf.mxu0
      %466 = vdwg.mxu0
      %v467 = vld [vmem:[%s200] sm:$0xff]
      %v468 = vld [vmem:[%s200 + $0x8] sm:$0xff]
      %v469 = vld [vmem:[%s200 + $0x10] sm:$0xff]
      %v470 = vadd.f32 %v467, %v421
      %v471 = vxor.u32 %v470, 2147483648
      %v472 = vmul.f32 %v471, 1.442695
      %v473 = vpow.pop %v472
      %v474 = vadd.f32 %v473, 1.0
      %v475 = vrcp.pop %v474
      %v476 = vmul.f32 1.0, %v475
      %v477 = vadd.f32 %v468, %v423
      %v478 = vxor.u32 %v477, 2147483648
      %v479 = vmul.f32 %v478, 1.442695
      %v480 = vpow.pop %v479
      %v481 = vadd.f32 %v480, 1.0
      %v482 = vrcp.pop %v481
      %v483 = vmul.f32 1.0, %v482
      %v484 = vadd.f32 %v462, %v222
      %v485 = vmul.f32 %v476, %v484
      %v486 = vadd.f32 %v469, %v485
      %v487 = vtanh.pop %v486
      %v488 = vsub.f32 1.0, %v483
      %v489 = vmul.f32 %v488, %v487
      %v490 = vmul.f32 %v483, %v224
      %v491 = vadd.f32 %v489, %v490
      %492 = vst [vmem:[%s209] sm:$0xff] %v491
      %v493 = vpack.c.bf16 %v491, %v491
      %v494 = vld [vmem:[%s1] sm:$0xff]
      %v495 = vld [vmem:[%s1 + $0x8] sm:$0xf]
      %v496 = vld [vmem:[%s1 + $0xc] sm:$0xff]
      %v497 = vld [vmem:[%s1 + $0x14] sm:$0xf]
      %v498 = vld [vmem:[%s1 + $0x18] sm:$0xff]
      %v499 = vld [vmem:[%s1 + $0x20] sm:$0xf]
      %v500 = vld [vmem:[%s1 + $0x24] sm:$0xff]
      %v501 = vld [vmem:[%s1 + $0x2c] sm:$0xf]
      %v502 = vld [vmem:[%s1 + $0x30] sm:$0xff]
      %v503 = vld [vmem:[%s1 + $0x38] sm:$0xf]
      %v504 = vld [vmem:[%s1 + $0x3c] sm:$0xff]
      %v505 = vld [vmem:[%s1 + $0x44] sm:$0xf]
      %v506 = vld [vmem:[%s1 + $0x48] sm:$0xff]
      %v507 = vld [vmem:[%s1 + $0x50] sm:$0xf]
      %v508 = vld [vmem:[%s1 + $0x54] sm:$0xff]
      %v509 = vld [vmem:[%s1 + $0x5c] sm:$0xf]
      %v510 = vld [vmem:[%s1 + $0x60] sm:$0xff]
      %v511 = vld [vmem:[%s1 + $0x68] sm:$0xf]
      %v512 = vld [vmem:[%s1 + $0x6c] sm:$0xff]
      %v513 = vld [vmem:[%s1 + $0x74] sm:$0xf]
      %v514 = vld [vmem:[%s1 + $0x78] sm:$0xff]
      %v515 = vld [vmem:[%s1 + $0x80] sm:$0xf]
      %v516 = vld [vmem:[%s1 + $0x84] sm:$0xff]
      %v517 = vld [vmem:[%s1 + $0x8c] sm:$0xf]
      %v518 = vld [vmem:[%s1 + $0x90] sm:$0xff]
      %v519 = vld [vmem:[%s1 + $0x98] sm:$0xf]
      %v520 = vld [vmem:[%s1 + $0x9c] sm:$0xff]
      %v521 = vld [vmem:[%s1 + $0xa4] sm:$0xf]
      %v522 = vld [vmem:[%s1 + $0xa8] sm:$0xff]
      %v523 = vld [vmem:[%s1 + $0xb0] sm:$0xf]
      %v524 = vld [vmem:[%s1 + $0xb4] sm:$0xff]
      %v525 = vld [vmem:[%s1 + $0xbc] sm:$0xf]
      %v558 = vunpack.c.l.b16 %v494
      %v559 = vunpack.c.h.b16 %v494
      %v560 = vunpack.c.l.b16 %v495
      %v561 = vunpack.c.l.b16 %v496
      %v562 = vunpack.c.h.b16 %v496
      %v563 = vunpack.c.l.b16 %v497
      %v564 = vunpack.c.l.b16 %v498
      %v565 = vunpack.c.h.b16 %v498
      %v566 = vunpack.c.l.b16 %v499
      %v567 = vunpack.c.l.b16 %v500
      %v568 = vunpack.c.h.b16 %v500
      %v569 = vunpack.c.l.b16 %v501
      %v570 = vunpack.c.l.b16 %v502
      %v571 = vunpack.c.h.b16 %v502
      %v572 = vunpack.c.l.b16 %v503
      %v573 = vunpack.c.l.b16 %v504
      %v574 = vunpack.c.h.b16 %v504
      %v575 = vunpack.c.l.b16 %v505
      %v576 = vunpack.c.l.b16 %v506
      %v577 = vunpack.c.h.b16 %v506
      %v578 = vunpack.c.l.b16 %v507
      %v579 = vunpack.c.l.b16 %v508
      %v580 = vunpack.c.h.b16 %v508
      %v581 = vunpack.c.l.b16 %v509
      %v582 = vunpack.c.l.b16 %v510
      %v583 = vunpack.c.h.b16 %v510
      %v584 = vunpack.c.l.b16 %v511
      %v585 = vunpack.c.l.b16 %v512
      %v586 = vunpack.c.h.b16 %v512
      %v587 = vunpack.c.l.b16 %v513
      %v588 = vunpack.c.l.b16 %v514
      %v589 = vunpack.c.h.b16 %v514
      %v590 = vunpack.c.l.b16 %v515
      %v591 = vunpack.c.l.b16 %v516
      %v592 = vunpack.c.h.b16 %v516
      %v593 = vunpack.c.l.b16 %v517
      %v594 = vunpack.c.l.b16 %v518
      %v595 = vunpack.c.h.b16 %v518
      %v596 = vunpack.c.l.b16 %v519
      %v597 = vunpack.c.l.b16 %v520
      %v598 = vunpack.c.h.b16 %v520
      %v599 = vunpack.c.l.b16 %v521
      %v600 = vunpack.c.l.b16 %v522
      %v601 = vunpack.c.h.b16 %v522
      %v602 = vunpack.c.l.b16 %v523
      %v603 = vunpack.c.l.b16 %v524
      %v604 = vunpack.c.h.b16 %v524
      %v605 = vunpack.c.l.b16 %v525
      %v606 = vpack.c.b16 %v561, %v558
      %v607 = vpack.c.b16 %v562, %v559
      %v608 = vpack.c.b16 %v563, %v560
      %v609 = vpack.c.b16 %v567, %v564
      %v610 = vpack.c.b16 %v568, %v565
      %v611 = vpack.c.b16 %v569, %v566
      %v612 = vpack.c.b16 %v573, %v570
      %v613 = vpack.c.b16 %v574, %v571
      %v614 = vpack.c.b16 %v575, %v572
      %v615 = vpack.c.b16 %v579, %v576
      %v616 = vpack.c.b16 %v580, %v577
      %v617 = vpack.c.b16 %v581, %v578
      %v618 = vpack.c.b16 %v585, %v582
      %v619 = vpack.c.b16 %v586, %v583
      %v620 = vpack.c.b16 %v587, %v584
      %v621 = vpack.c.b16 %v591, %v588
      %v622 = vpack.c.b16 %v592, %v589
      %v623 = vpack.c.b16 %v593, %v590
      %v624 = vpack.c.b16 %v597, %v594
      %v625 = vpack.c.b16 %v598, %v595
      %v626 = vpack.c.b16 %v599, %v596
      %v627 = vpack.c.b16 %v603, %v600
      %v628 = vpack.c.b16 %v604, %v601
      %v629 = vpack.c.b16 %v605, %v602
      %654 = vmatprep.subr.bf16.mxu0 %v628
      %655 = vmatpush1.bf16.msra.mxu0 %v627
      %656 = vmatprep.subr.bf16.mxu0 %v625
      %657 = vmatpush1.bf16.msra.mxu0 %v624
      %658 = vmatprep.subr.bf16.mxu0 %v622
      %659 = vmatpush1.bf16.msra.mxu0 %v621
      %660 = vmatprep.subr.bf16.mxu0 %v619
      %661 = vmatpush1.bf16.msra.mxu0 %v618
      %662 = vmatprep.subr.bf16.mxu0 %v616
      %663 = vmatpush1.bf16.msra.mxu0 %v615
      %664 = vmatprep.subr.bf16.mxu0 %v613
      %665 = vmatpush1.bf16.msra.mxu0 %v612
      %666 = vmatprep.subr.bf16.mxu0 %v610
      %667 = vmatpush1.bf16.msra.mxu0 %v609
      %668 = vmatprep.subr.bf16.mxu0 %v607
      %669 = vmatpush1.bf16.msra.mxu0 %v606
      %670 = vmatprep.subr.bf16.mxu0 0
      %671 = vmatpush2.bf16.msra.mxu0 0
      %672 = vmatprep.subr.bf16.mxu0 0
      %673 = vmatpush2.bf16.msra.mxu0 0
      %674 = vmatprep.subr.bf16.mxu0 0
      %675 = vmatpush2.bf16.msra.mxu0 0
      %676 = vmatprep.subr.bf16.mxu0 0
      %677 = vmatpush2.bf16.msra.mxu0 0
      %678 = vmatprep.subr.bf16.mxu0 0
      %679 = vmatpush2.bf16.msra.mxu0 0
      %680 = vmatprep.subr.bf16.mxu0 0
      %681 = vmatpush2.bf16.msra.mxu0 0
      %682 = vmatprep.subr.bf16.mxu0 0
      %683 = vmatpush2.bf16.msra.mxu0 0
      %684 = vmatprep.subr.bf16.mxu0 0
      %685 = vmatpush2.bf16.msra.mxu0 0
      %686 = vmatprep.mubr.bf16.mxu0 0
      %687 = vmatmul.mubr.bf16.gmra.mxu0 %v493
      %v688 = vpop.f32.mrf.mxu0
      %v689 = vadd.f32 0.0, %v688
      %v690 = vpop.f32.mrf.mxu0
      %v691 = vadd.f32 0.0, %v690
      %v692 = vpop.f32.mrf.mxu0
      %v693 = vpop.f32.mrf.mxu0
      %694 = vdwg.mxu0
      %695 = vmatprep.subr.bf16.mxu0 0
      %696 = vmatpush1.bf16.msra.mxu0 %v629
      %697 = vmatprep.subr.bf16.mxu0 0
      %698 = vmatpush1.bf16.msra.mxu0 %v626
      %699 = vmatprep.subr.bf16.mxu0 0
      %700 = vmatpush1.bf16.msra.mxu0 %v623
      %701 = vmatprep.subr.bf16.mxu0 0
      %702 = vmatpush1.bf16.msra.mxu0 %v620
      %703 = vmatprep.subr.bf16.mxu0 0
      %704 = vmatpush1.bf16.msra.mxu0 %v617
      %705 = vmatprep.subr.bf16.mxu0 0
      %706 = vmatpush1.bf16.msra.mxu0 %v614
      %707 = vmatprep.subr.bf16.mxu0 0
      %708 = vmatpush1.bf16.msra.mxu0 %v611
      %709 = vmatprep.subr.bf16.mxu0 0
      %710 = vmatpush1.bf16.msra.mxu0 %v608
      %711 = vmatprep.subr.bf16.mxu0 0
      %712 = vmatpush2.bf16.msra.mxu0 0
      %713 = vmatprep.subr.bf16.mxu0 0
      %714 = vmatpush2.bf16.msra.mxu0 0
      %715 = vmatprep.subr.bf16.mxu0 0
      %716 = vmatpush2.bf16.msra.mxu0 0
      %717 = vmatprep.subr.bf16.mxu0 0
      %718 = vmatpush2.bf16.msra.mxu0 0
      %719 = vmatprep.subr.bf16.mxu0 0
      %720 = vmatpush2.bf16.msra.mxu0 0
      %721 = vmatprep.subr.bf16.mxu0 0
      %722 = vmatpush2.bf16.msra.mxu0 0
      %723 = vmatprep.subr.bf16.mxu0 0
      %724 = vmatpush2.bf16.msra.mxu0 0
      %725 = vmatprep.subr.bf16.mxu0 0
      %726 = vmatpush2.bf16.msra.mxu0 0
      %727 = vmatprep.mubr.bf16.mxu0 0
      %728 = vmatmul.mubr.bf16.gmra.mxu0 %v493
      %v729 = vpop.f32.mrf.mxu0
      %v730 = vadd.f32 0.0, %v729
      %v731 = vpop.f32.mrf.mxu0
      %v732 = vpop.f32.mrf.mxu0
      %v733 = vpop.f32.mrf.mxu0
      %734 = vdwg.mxu0
      %s735 = scalar_lea.vmem %s200, 24
      %v736 = vld [vmem:[%s735] sm:$0xff]
      %v737 = vld [vmem:[%s735 + $0x8] sm:$0xff]
      %v738 = vld [vmem:[%s735 + $0x10] sm:$0xff]
      %v739 = vadd.f32 %v736, %v689
      %v740 = vxor.u32 %v739, 2147483648
      %v741 = vmul.f32 %v740, 1.442695
      %v742 = vpow.pop %v741
      %v743 = vadd.f32 %v742, 1.0
      %v744 = vrcp.pop %v743
      %v745 = vmul.f32 1.0, %v744
      %v746 = vadd.f32 %v737, %v691
      %v747 = vxor.u32 %v746, 2147483648
      %v748 = vmul.f32 %v747, 1.442695
      %v749 = vpow.pop %v748
      %v750 = vadd.f32 %v749, 1.0
      %v751 = vrcp.pop %v750
      %v752 = vmul.f32 1.0, %v751
      %v753 = vadd.f32 %v730, %v222
      %v754 = vmul.f32 %v745, %v753
      %v755 = vadd.f32 %v738, %v754
      %v756 = vtanh.pop %v755
      %v757 = vsub.f32 1.0, %v752
      %v758 = vmul.f32 %v757, %v756
      %v759 = vmul.f32 %v752, %v491
      %v760 = vadd.f32 %v758, %v759
      %s761 = scalar_lea.vmem %s209, 8
      %762 = vst [vmem:[%s761] sm:$0xff] %v760
      %v763 = vpack.c.bf16 %v760, %v760
      %v764 = vld [vmem:[%s1] sm:$0xff]
      %v765 = vld [vmem:[%s1 + $0x8] sm:$0xf]
      %v766 = vld [vmem:[%s1 + $0xc] sm:$0xff]
      %v767 = vld [vmem:[%s1 + $0x14] sm:$0xf]
      %v768 = vld [vmem:[%s1 + $0x18] sm:$0xff]
      %v769 = vld [vmem:[%s1 + $0x20] sm:$0xf]
      %v770 = vld [vmem:[%s1 + $0x24] sm:$0xff]
      %v771 = vld [vmem:[%s1 + $0x2c] sm:$0xf]
      %v772 = vld [vmem:[%s1 + $0x30] sm:$0xff]
      %v773 = vld [vmem:[%s1 + $0x38] sm:$0xf]
      %v774 = vld [vmem:[%s1 + $0x3c] sm:$0xff]
      %v775 = vld [vmem:[%s1 + $0x44] sm:$0xf]
      %v776 = vld [vmem:[%s1 + $0x48] sm:$0xff]
      %v777 = vld [vmem:[%s1 + $0x50] sm:$0xf]
      %v778 = vld [vmem:[%s1 + $0x54] sm:$0xff]
      %v779 = vld [vmem:[%s1 + $0x5c] sm:$0xf]
      %v780 = vld [vmem:[%s1 + $0x60] sm:$0xff]
      %v781 = vld [vmem:[%s1 + $0x68] sm:$0xf]
      %v782 = vld [vmem:[%s1 + $0x6c] sm:$0xff]
      %v783 = vld [vmem:[%s1 + $0x74] sm:$0xf]
      %v784 = vld [vmem:[%s1 + $0x78] sm:$0xff]
      %v785 = vld [vmem:[%s1 + $0x80] sm:$0xf]
      %v786 = vld [vmem:[%s1 + $0x84] sm:$0xff]
      %v787 = vld [vmem:[%s1 + $0x8c] sm:$0xf]
      %v788 = vld [vmem:[%s1 + $0x90] sm:$0xff]
      %v789 = vld [vmem:[%s1 + $0x98] sm:$0xf]
      %v790 = vld [vmem:[%s1 + $0x9c] sm:$0xff]
      %v791 = vld [vmem:[%s1 + $0xa4] sm:$0xf]
      %v792 = vld [vmem:[%s1 + $0xa8] sm:$0xff]
      %v793 = vld [vmem:[%s1 + $0xb0] sm:$0xf]
      %v794 = vld [vmem:[%s1 + $0xb4] sm:$0xff]
      %v795 = vld [vmem:[%s1 + $0xbc] sm:$0xf]
      %v828 = vunpack.c.l.b16 %v764
      %v829 = vunpack.c.h.b16 %v764
      %v830 = vunpack.c.l.b16 %v765
      %v831 = vunpack.c.l.b16 %v766
      %v832 = vunpack.c.h.b16 %v766
      %v833 = vunpack.c.l.b16 %v767
      %v834 = vunpack.c.l.b16 %v768
      %v835 = vunpack.c.h.b16 %v768
      %v836 = vunpack.c.l.b16 %v769
      %v837 = vunpack.c.l.b16 %v770
      %v838 = vunpack.c.h.b16 %v770
      %v839 = vunpack.c.l.b16 %v771
      %v840 = vunpack.c.l.b16 %v772
      %v841 = vunpack.c.h.b16 %v772
      %v842 = vunpack.c.l.b16 %v773
      %v843 = vunpack.c.l.b16 %v774
      %v844 = vunpack.c.h.b16 %v774
      %v845 = vunpack.c.l.b16 %v775
      %v846 = vunpack.c.l.b16 %v776
      %v847 = vunpack.c.h.b16 %v776
      %v848 = vunpack.c.l.b16 %v777
      %v849 = vunpack.c.l.b16 %v778
      %v850 = vunpack.c.h.b16 %v778
      %v851 = vunpack.c.l.b16 %v779
      %v852 = vunpack.c.l.b16 %v780
      %v853 = vunpack.c.h.b16 %v780
      %v854 = vunpack.c.l.b16 %v781
      %v855 = vunpack.c.l.b16 %v782
      %v856 = vunpack.c.h.b16 %v782
      %v857 = vunpack.c.l.b16 %v783
      %v858 = vunpack.c.l.b16 %v784
      %v859 = vunpack.c.h.b16 %v784
      %v860 = vunpack.c.l.b16 %v785
      %v861 = vunpack.c.l.b16 %v786
      %v862 = vunpack.c.h.b16 %v786
      %v863 = vunpack.c.l.b16 %v787
      %v864 = vunpack.c.l.b16 %v788
      %v865 = vunpack.c.h.b16 %v788
      %v866 = vunpack.c.l.b16 %v789
      %v867 = vunpack.c.l.b16 %v790
      %v868 = vunpack.c.h.b16 %v790
      %v869 = vunpack.c.l.b16 %v791
      %v870 = vunpack.c.l.b16 %v792
      %v871 = vunpack.c.h.b16 %v792
      %v872 = vunpack.c.l.b16 %v793
      %v873 = vunpack.c.l.b16 %v794
      %v874 = vunpack.c.h.b16 %v794
      %v875 = vunpack.c.l.b16 %v795
      %v876 = vpack.c.b16 %v831, %v828
      %v877 = vpack.c.b16 %v832, %v829
      %v878 = vpack.c.b16 %v833, %v830
      %v879 = vpack.c.b16 %v837, %v834
      %v880 = vpack.c.b16 %v838, %v835
      %v881 = vpack.c.b16 %v839, %v836
      %v882 = vpack.c.b16 %v843, %v840
      %v883 = vpack.c.b16 %v844, %v841
      %v884 = vpack.c.b16 %v845, %v842
      %v885 = vpack.c.b16 %v849, %v846
      %v886 = vpack.c.b16 %v850, %v847
      %v887 = vpack.c.b16 %v851, %v848
      %v888 = vpack.c.b16 %v855, %v852
      %v889 = vpack.c.b16 %v856, %v853
      %v890 = vpack.c.b16 %v857, %v854
      %v891 = vpack.c.b16 %v861, %v858
      %v892 = vpack.c.b16 %v862, %v859
      %v893 = vpack.c.b16 %v863, %v860
      %v894 = vpack.c.b16 %v867, %v864
      %v895 = vpack.c.b16 %v868, %v865
      %v896 = vpack.c.b16 %v869, %v866
      %v897 = vpack.c.b16 %v873, %v870
      %v898 = vpack.c.b16 %v874, %v871
      %v899 = vpack.c.b16 %v875, %v872
      %924 = vmatprep.subr.bf16.mxu0 %v898
      %925 = vmatpush1.bf16.msra.mxu0 %v897
      %926 = vmatprep.subr.bf16.mxu0 %v895
      %927 = vmatpush1.bf16.msra.mxu0 %v894
      %928 = vmatprep.subr.bf16.mxu0 %v892
      %929 = vmatpush1.bf16.msra.mxu0 %v891
      %930 = vmatprep.subr.bf16.mxu0 %v889
      %931 = vmatpush1.bf16.msra.mxu0 %v888
      %932 = vmatprep.subr.bf16.mxu0 %v886
      %933 = vmatpush1.bf16.msra.mxu0 %v885
      %934 = vmatprep.subr.bf16.mxu0 %v883
      %935 = vmatpush1.bf16.msra.mxu0 %v882
      %936 = vmatprep.subr.bf16.mxu0 %v880
      %937 = vmatpush1.bf16.msra.mxu0 %v879
      %938 = vmatprep.subr.bf16.mxu0 %v877
      %939 = vmatpush1.bf16.msra.mxu0 %v876
      %940 = vmatprep.subr.bf16.mxu0 0
      %941 = vmatpush2.bf16.msra.mxu0 0
      %942 = vmatprep.subr.bf16.mxu0 0
      %943 = vmatpush2.bf16.msra.mxu0 0
      %944 = vmatprep.subr.bf16.mxu0 0
      %945 = vmatpush2.bf16.msra.mxu0 0
      %946 = vmatprep.subr.bf16.mxu0 0
      %947 = vmatpush2.bf16.msra.mxu0 0
      %948 = vmatprep.subr.bf16.mxu0 0
      %949 = vmatpush2.bf16.msra.mxu0 0
      %950 = vmatprep.subr.bf16.mxu0 0
      %951 = vmatpush2.bf16.msra.mxu0 0
      %952 = vmatprep.subr.bf16.mxu0 0
      %953 = vmatpush2.bf16.msra.mxu0 0
      %954 = vmatprep.subr.bf16.mxu0 0
      %955 = vmatpush2.bf16.msra.mxu0 0
      %956 = vmatprep.mubr.bf16.mxu0 0
      %957 = vmatmul.mubr.bf16.gmra.mxu0 %v763
      %v958 = vpop.f32.mrf.mxu0
      %v959 = vadd.f32 0.0, %v958
      %v960 = vpop.f32.mrf.mxu0
      %v961 = vadd.f32 0.0, %v960
      %v962 = vpop.f32.mrf.mxu0
      %v963 = vpop.f32.mrf.mxu0
      %964 = vdwg.mxu0
      %965 = vmatprep.subr.bf16.mxu0 0
      %966 = vmatpush1.bf16.msra.mxu0 %v899
      %967 = vmatprep.subr.bf16.mxu0 0
      %968 = vmatpush1.bf16.msra.mxu0 %v896
      %969 = vmatprep.subr.bf16.mxu0 0
      %970 = vmatpush1.bf16.msra.mxu0 %v893
      %971 = vmatprep.subr.bf16.mxu0 0
      %972 = vmatpush1.bf16.msra.mxu0 %v890
      %973 = vmatprep.subr.bf16.mxu0 0
      %974 = vmatpush1.bf16.msra.mxu0 %v887
      %975 = vmatprep.subr.bf16.mxu0 0
      %976 = vmatpush1.bf16.msra.mxu0 %v884
      %977 = vmatprep.subr.bf16.mxu0 0
      %978 = vmatpush1.bf16.msra.mxu0 %v881
      %979 = vmatprep.subr.bf16.mxu0 0
      %980 = vmatpush1.bf16.msra.mxu0 %v878
      %981 = vmatprep.subr.bf16.mxu0 0
      %982 = vmatpush2.bf16.msra.mxu0 0
      %983 = vmatprep.subr.bf16.mxu0 0
      %984 = vmatpush2.bf16.msra.mxu0 0
      %985 = vmatprep.subr.bf16.mxu0 0
      %986 = vmatpush2.bf16.msra.mxu0 0
      %987 = vmatprep.subr.bf16.mxu0 0
      %988 = vmatpush2.bf16.msra.mxu0 0
      %989 = vmatprep.subr.bf16.mxu0 0
      %990 = vmatpush2.bf16.msra.mxu0 0
      %991 = vmatprep.subr.bf16.mxu0 0
      %992 = vmatpush2.bf16.msra.mxu0 0
      %993 = vmatprep.subr.bf16.mxu0 0
      %994 = vmatpush2.bf16.msra.mxu0 0
      %995 = vmatprep.subr.bf16.mxu0 0
      %996 = vmatpush2.bf16.msra.mxu0 0
      %997 = vmatprep.mubr.bf16.mxu0 0
      %998 = vmatmul.mubr.bf16.gmra.mxu0 %v763
      %v999 = vpop.f32.mrf.mxu0
      %v1000 = vadd.f32 0.0, %v999
      %v1001 = vpop.f32.mrf.mxu0
      %v1002 = vpop.f32.mrf.mxu0
      %v1003 = vpop.f32.mrf.mxu0
      %1004 = vdwg.mxu0
      %s1005 = scalar_lea.vmem %s200, 48
      %v1006 = vld [vmem:[%s1005] sm:$0xff]
      %v1007 = vld [vmem:[%s1005 + $0x8] sm:$0xff]
      %v1008 = vld [vmem:[%s1005 + $0x10] sm:$0xff]
      %v1009 = vadd.f32 %v1006, %v959
      %v1010 = vxor.u32 %v1009, 2147483648
      %v1011 = vmul.f32 %v1010, 1.442695
      %v1012 = vpow.pop %v1011
      %v1013 = vadd.f32 %v1012, 1.0
      %v1014 = vrcp.pop %v1013
      %v1015 = vmul.f32 1.0, %v1014
      %v1016 = vadd.f32 %v1007, %v961
      %v1017 = vxor.u32 %v1016, 2147483648
      %v1018 = vmul.f32 %v1017, 1.442695
      %v1019 = vpow.pop %v1018
      %v1020 = vadd.f32 %v1019, 1.0
      %v1021 = vrcp.pop %v1020
      %v1022 = vmul.f32 1.0, %v1021
      %v1023 = vadd.f32 %v1000, %v222
      %v1024 = vmul.f32 %v1015, %v1023
      %v1025 = vadd.f32 %v1008, %v1024
      %v1026 = vtanh.pop %v1025
      %v1027 = vsub.f32 1.0, %v1022
      %v1028 = vmul.f32 %v1027, %v1026
      %v1029 = vmul.f32 %v1022, %v760
      %v1030 = vadd.f32 %v1028, %v1029
      %s1031 = scalar_lea.vmem %s209, 16
      %1032 = vst [vmem:[%s1031] sm:$0xff] %v1030
      %v1033 = vpack.c.bf16 %v1030, %v1030
      %v1034 = vld [vmem:[%s1] sm:$0xff]
      %v1035 = vld [vmem:[%s1 + $0x8] sm:$0xf]
      %v1036 = vld [vmem:[%s1 + $0xc] sm:$0xff]
      %v1037 = vld [vmem:[%s1 + $0x14] sm:$0xf]
      %v1038 = vld [vmem:[%s1 + $0x18] sm:$0xff]
      %v1039 = vld [vmem:[%s1 + $0x20] sm:$0xf]
      %v1040 = vld [vmem:[%s1 + $0x24] sm:$0xff]
      %v1041 = vld [vmem:[%s1 + $0x2c] sm:$0xf]
      %v1042 = vld [vmem:[%s1 + $0x30] sm:$0xff]
      %v1043 = vld [vmem:[%s1 + $0x38] sm:$0xf]
      %v1044 = vld [vmem:[%s1 + $0x3c] sm:$0xff]
      %v1045 = vld [vmem:[%s1 + $0x44] sm:$0xf]
      %v1046 = vld [vmem:[%s1 + $0x48] sm:$0xff]
      %v1047 = vld [vmem:[%s1 + $0x50] sm:$0xf]
      %v1048 = vld [vmem:[%s1 + $0x54] sm:$0xff]
      %v1049 = vld [vmem:[%s1 + $0x5c] sm:$0xf]
      %v1050 = vld [vmem:[%s1 + $0x60] sm:$0xff]
      %v1051 = vld [vmem:[%s1 + $0x68] sm:$0xf]
      %v1052 = vld [vmem:[%s1 + $0x6c] sm:$0xff]
      %v1053 = vld [vmem:[%s1 + $0x74] sm:$0xf]
      %v1054 = vld [vmem:[%s1 + $0x78] sm:$0xff]
      %v1055 = vld [vmem:[%s1 + $0x80] sm:$0xf]
      %v1056 = vld [vmem:[%s1 + $0x84] sm:$0xff]
      %v1057 = vld [vmem:[%s1 + $0x8c] sm:$0xf]
      %v1058 = vld [vmem:[%s1 + $0x90] sm:$0xff]
      %v1059 = vld [vmem:[%s1 + $0x98] sm:$0xf]
      %v1060 = vld [vmem:[%s1 + $0x9c] sm:$0xff]
      %v1061 = vld [vmem:[%s1 + $0xa4] sm:$0xf]
      %v1062 = vld [vmem:[%s1 + $0xa8] sm:$0xff]
      %v1063 = vld [vmem:[%s1 + $0xb0] sm:$0xf]
      %v1064 = vld [vmem:[%s1 + $0xb4] sm:$0xff]
      %v1065 = vld [vmem:[%s1 + $0xbc] sm:$0xf]
      %v1098 = vunpack.c.l.b16 %v1034
      %v1099 = vunpack.c.h.b16 %v1034
      %v1100 = vunpack.c.l.b16 %v1035
      %v1101 = vunpack.c.l.b16 %v1036
      %v1102 = vunpack.c.h.b16 %v1036
      %v1103 = vunpack.c.l.b16 %v1037
      %v1104 = vunpack.c.l.b16 %v1038
      %v1105 = vunpack.c.h.b16 %v1038
      %v1106 = vunpack.c.l.b16 %v1039
      %v1107 = vunpack.c.l.b16 %v1040
      %v1108 = vunpack.c.h.b16 %v1040
      %v1109 = vunpack.c.l.b16 %v1041
      %v1110 = vunpack.c.l.b16 %v1042
      %v1111 = vunpack.c.h.b16 %v1042
      %v1112 = vunpack.c.l.b16 %v1043
      %v1113 = vunpack.c.l.b16 %v1044
      %v1114 = vunpack.c.h.b16 %v1044
      %v1115 = vunpack.c.l.b16 %v1045
      %v1116 = vunpack.c.l.b16 %v1046
      %v1117 = vunpack.c.h.b16 %v1046
      %v1118 = vunpack.c.l.b16 %v1047
      %v1119 = vunpack.c.l.b16 %v1048
      %v1120 = vunpack.c.h.b16 %v1048
      %v1121 = vunpack.c.l.b16 %v1049
      %v1122 = vunpack.c.l.b16 %v1050
      %v1123 = vunpack.c.h.b16 %v1050
      %v1124 = vunpack.c.l.b16 %v1051
      %v1125 = vunpack.c.l.b16 %v1052
      %v1126 = vunpack.c.h.b16 %v1052
      %v1127 = vunpack.c.l.b16 %v1053
      %v1128 = vunpack.c.l.b16 %v1054
      %v1129 = vunpack.c.h.b16 %v1054
      %v1130 = vunpack.c.l.b16 %v1055
      %v1131 = vunpack.c.l.b16 %v1056
      %v1132 = vunpack.c.h.b16 %v1056
      %v1133 = vunpack.c.l.b16 %v1057
      %v1134 = vunpack.c.l.b16 %v1058
      %v1135 = vunpack.c.h.b16 %v1058
      %v1136 = vunpack.c.l.b16 %v1059
      %v1137 = vunpack.c.l.b16 %v1060
      %v1138 = vunpack.c.h.b16 %v1060
      %v1139 = vunpack.c.l.b16 %v1061
      %v1140 = vunpack.c.l.b16 %v1062
      %v1141 = vunpack.c.h.b16 %v1062
      %v1142 = vunpack.c.l.b16 %v1063
      %v1143 = vunpack.c.l.b16 %v1064
      %v1144 = vunpack.c.h.b16 %v1064
      %v1145 = vunpack.c.l.b16 %v1065
      %v1146 = vpack.c.b16 %v1101, %v1098
      %v1147 = vpack.c.b16 %v1102, %v1099
      %v1148 = vpack.c.b16 %v1103, %v1100
      %v1149 = vpack.c.b16 %v1107, %v1104
      %v1150 = vpack.c.b16 %v1108, %v1105
      %v1151 = vpack.c.b16 %v1109, %v1106
      %v1152 = vpack.c.b16 %v1113, %v1110
      %v1153 = vpack.c.b16 %v1114, %v1111
      %v1154 = vpack.c.b16 %v1115, %v1112
      %v1155 = vpack.c.b16 %v1119, %v1116
      %v1156 = vpack.c.b16 %v1120, %v1117
      %v1157 = vpack.c.b16 %v1121, %v1118
      %v1158 = vpack.c.b16 %v1125, %v1122
      %v1159 = vpack.c.b16 %v1126, %v1123
      %v1160 = vpack.c.b16 %v1127, %v1124
      %v1161 = vpack.c.b16 %v1131, %v1128
      %v1162 = vpack.c.b16 %v1132, %v1129
      %v1163 = vpack.c.b16 %v1133, %v1130
      %v1164 = vpack.c.b16 %v1137, %v1134
      %v1165 = vpack.c.b16 %v1138, %v1135
      %v1166 = vpack.c.b16 %v1139, %v1136
      %v1167 = vpack.c.b16 %v1143, %v1140
      %v1168 = vpack.c.b16 %v1144, %v1141
      %v1169 = vpack.c.b16 %v1145, %v1142
      %1194 = vmatprep.subr.bf16.mxu0 %v1168
      %1195 = vmatpush1.bf16.msra.mxu0 %v1167
      %1196 = vmatprep.subr.bf16.mxu0 %v1165
      %1197 = vmatpush1.bf16.msra.mxu0 %v1164
      %1198 = vmatprep.subr.bf16.mxu0 %v1162
      %1199 = vmatpush1.bf16.msra.mxu0 %v1161
      %1200 = vmatprep.subr.bf16.mxu0 %v1159
      %1201 = vmatpush1.bf16.msra.mxu0 %v1158
      %1202 = vmatprep.subr.bf16.mxu0 %v1156
      %1203 = vmatpush1.bf16.msra.mxu0 %v1155
      %1204 = vmatprep.subr.bf16.mxu0 %v1153
      %1205 = vmatpush1.bf16.msra.mxu0 %v1152
      %1206 = vmatprep.subr.bf16.mxu0 %v1150
      %1207 = vmatpush1.bf16.msra.mxu0 %v1149
      %1208 = vmatprep.subr.bf16.mxu0 %v1147
      %1209 = vmatpush1.bf16.msra.mxu0 %v1146
      %1210 = vmatprep.subr.bf16.mxu0 0
      %1211 = vmatpush2.bf16.msra.mxu0 0
      %1212 = vmatprep.subr.bf16.mxu0 0
      %1213 = vmatpush2.bf16.msra.mxu0 0
      %1214 = vmatprep.subr.bf16.mxu0 0
      %1215 = vmatpush2.bf16.msra.mxu0 0
      %1216 = vmatprep.subr.bf16.mxu0 0
      %1217 = vmatpush2.bf16.msra.mxu0 0
      %1218 = vmatprep.subr.bf16.mxu0 0
      %1219 = vmatpush2.bf16.msra.mxu0 0
      %1220 = vmatprep.subr.bf16.mxu0 0
      %1221 = vmatpush2.bf16.msra.mxu0 0
      %1222 = vmatprep.subr.bf16.mxu0 0
      %1223 = vmatpush2.bf16.msra.mxu0 0
      %1224 = vmatprep.subr.bf16.mxu0 0
      %1225 = vmatpush2.bf16.msra.mxu0 0
      %1226 = vmatprep.mubr.bf16.mxu0 0
      %1227 = vmatmul.mubr.bf16.gmra.mxu0 %v1033
      %v1228 = vpop.f32.mrf.mxu0
      %v1229 = vadd.f32 0.0, %v1228
      %v1230 = vpop.f32.mrf.mxu0
      %v1231 = vadd.f32 0.0, %v1230
      %v1232 = vpop.f32.mrf.mxu0
      %v1233 = vpop.f32.mrf.mxu0
      %1234 = vdwg.mxu0
      %1235 = vmatprep.subr.bf16.mxu0 0
      %1236 = vmatpush1.bf16.msra.mxu0 %v1169
      %1237 = vmatprep.subr.bf16.mxu0 0
      %1238 = vmatpush1.bf16.msra.mxu0 %v1166
      %1239 = vmatprep.subr.bf16.mxu0 0
      %1240 = vmatpush1.bf16.msra.mxu0 %v1163
      %1241 = vmatprep.subr.bf16.mxu0 0
      %1242 = vmatpush1.bf16.msra.mxu0 %v1160
      %1243 = vmatprep.subr.bf16.mxu0 0
      %1244 = vmatpush1.bf16.msra.mxu0 %v1157
      %1245 = vmatprep.subr.bf16.mxu0 0
      %1246 = vmatpush1.bf16.msra.mxu0 %v1154
      %1247 = vmatprep.subr.bf16.mxu0 0
      %1248 = vmatpush1.bf16.msra.mxu0 %v1151
      %1249 = vmatprep.subr.bf16.mxu0 0
      %1250 = vmatpush1.bf16.msra.mxu0 %v1148
      %1251 = vmatprep.subr.bf16.mxu0 0
      %1252 = vmatpush2.bf16.msra.mxu0 0
      %1253 = vmatprep.subr.bf16.mxu0 0
      %1254 = vmatpush2.bf16.msra.mxu0 0
      %1255 = vmatprep.subr.bf16.mxu0 0
      %1256 = vmatpush2.bf16.msra.mxu0 0
      %1257 = vmatprep.subr.bf16.mxu0 0
      %1258 = vmatpush2.bf16.msra.mxu0 0
      %1259 = vmatprep.subr.bf16.mxu0 0
      %1260 = vmatpush2.bf16.msra.mxu0 0
      %1261 = vmatprep.subr.bf16.mxu0 0
      %1262 = vmatpush2.bf16.msra.mxu0 0
      %1263 = vmatprep.subr.bf16.mxu0 0
      %1264 = vmatpush2.bf16.msra.mxu0 0
      %1265 = vmatprep.subr.bf16.mxu0 0
      %1266 = vmatpush2.bf16.msra.mxu0 0
      %1267 = vmatprep.mubr.bf16.mxu0 0
      %1268 = vmatmul.mubr.bf16.gmra.mxu0 %v1033
      %v1269 = vpop.f32.mrf.mxu0
      %v1270 = vadd.f32 0.0, %v1269
      %v1271 = vpop.f32.mrf.mxu0
      %v1272 = vpop.f32.mrf.mxu0
      %v1273 = vpop.f32.mrf.mxu0
      %1274 = vdwg.mxu0
      %s1275 = scalar_lea.vmem %s200, 72
      %v1276 = vld [vmem:[%s1275] sm:$0xff]
      %v1277 = vld [vmem:[%s1275 + $0x8] sm:$0xff]
      %v1278 = vld [vmem:[%s1275 + $0x10] sm:$0xff]
      %v1279 = vadd.f32 %v1276, %v1229
      %v1280 = vxor.u32 %v1279, 2147483648
      %v1281 = vmul.f32 %v1280, 1.442695
      %v1282 = vpow.pop %v1281
      %v1283 = vadd.f32 %v1282, 1.0
      %v1284 = vrcp.pop %v1283
      %v1285 = vmul.f32 1.0, %v1284
      %v1286 = vadd.f32 %v1277, %v1231
      %v1287 = vxor.u32 %v1286, 2147483648
      %v1288 = vmul.f32 %v1287, 1.442695
      %v1289 = vpow.pop %v1288
      %v1290 = vadd.f32 %v1289, 1.0
      %v1291 = vrcp.pop %v1290
      %v1292 = vmul.f32 1.0, %v1291
      %v1293 = vadd.f32 %v1270, %v222
      %v1294 = vmul.f32 %v1285, %v1293
      %v1295 = vadd.f32 %v1278, %v1294
      %v1296 = vtanh.pop %v1295
      %v1297 = vsub.f32 1.0, %v1292
      %v1298 = vmul.f32 %v1297, %v1296
      %v1299 = vmul.f32 %v1292, %v1030
      %v1300 = vadd.f32 %v1298, %v1299
      %s1301 = scalar_lea.vmem %s209, 24
      %1302 = vst [vmem:[%s1301] sm:$0xff] %v1300
      %1303 = vst [vmem:[#allocation2] sm:$0xff] %v1300
      %s1304 = smul.u32 4, %s19
      %p1305 = scmp.lt.s32.totalorder %s1304, 7
      %s1306 = scalar_select %p1305, %s1304, 7
      %p1307 = scmp.lt.s32.totalorder %s18, 0
      %s1308 = scalar_select %p1307, %s18, 0
      %s1309 = sadd.s32 %s1308, %s1306
      %s1310 = smul.addr %s1309, 8
      %s1311 = scalar_lea.vmem %s3, %s1310
      // Predicated region
      $region37: #{_lambda_.5} parent=31 // pred_check
        %p1312 = pneg %p116
      $region38: #{_lambda_.5} parent=31 // pred_check_branch
        %1314 = sbr.rel (%p1312) target = $region40
      $region39: #{_lambda_.5} parent=31 // pred_region
        %s1315 = smul.u32 4, %s19
      $region40: #{_lambda_.5} parent=31 // pred_fallthru
        _
    $region32: #{_lambda_.5} parent=5 // pred_fallthru
      _
    %p1316 = scmp.le.s32.totalorder 2, %s9
    // Predicated region
    $region41: #{_lambda_.5} parent=5 // pred_check
      %p1317 = pneg %p1316
    $region42: #{_lambda_.5} parent=5 // pred_check_branch
      %1319 = sbr.rel (%p1317) target = $region44
    $region43: #{_lambda_.5} parent=5 // pred_region
      %s1320 = ssub.s32 %s9, 2
      // Predicated region
      $region45: #{_lambda_.5} parent=43 // pred_check
        %p1321 = pneg %p122
      $region46: #{_lambda_.5} parent=43 // pred_check_branch
        %1323 = sbr.rel (%p1321) target = $region48
      $region47: #{_lambda_.5} parent=43 // pred_region
        %s1324 = smul.u32 4, %s21
        %p1325 = scmp.lt.s32.totalorder %s1324, 7
        %s1326 = scalar_select %p1325, %s1324, 7
        %p1327 = scmp.lt.s32.totalorder %s20, 0
        %s1328 = scalar_select %p1327, %s20, 0
        %s1329 = sadd.s32 %s1328, %s1326
        %s1330 = smul.addr %s1329, 8
        %s1331 = scalar_lea.vmem %s3, %s1330
      $region48: #{_lambda_.5} parent=43 // pred_fallthru
        _
    $region44: #{_lambda_.5} parent=5 // pred_fallthru
      _
  $region6: #{_lambda_.5} parent=0 // loop_footer
    %s13 = sadd.s32 1, %s9
  $region7: #{_lambda_.5} parent=0 // loop_footer_branch
    %8 = sbr.rel target = $region3
  $region8: #{_lambda_.5} parent=0 // loop_exit
    _

</llo_original>
